<compile_context>
chip_gen: v7x
topology: tpu7x:2x2x1
jax: 0.10.0
libtpu: 0.0.40
codegen_flags: <defaults>
</compile_context>

<pallas_src>
import functools

import jax
import jax.numpy as jnp
import numpy as np
from jax import lax
from jax.experimental import pallas as pl
from jax.experimental.pallas import tpu as pltpu

K = 7                      # spatial kernel size
P = (K - 1) // 2           # padding
KK = K * K


def _spatial_gate_kernel(params_ref, masks_ref, x_ref, o_ref, *, H, W):
    """One batch element per grid step; everything lane-dense over H*W."""
    HW = H * W
    x = x_ref[0]                                    # (C, HW), input dtype
    xf = x.astype(jnp.float32)

    # --- ChannelPool: max + sum over C (sum in f32; 1/C folded into weights) ---
    mx = jnp.max(xf, axis=0, keepdims=True)         # (1, HW)
    sm = jnp.sum(xf, axis=0, keepdims=True)         # (1, HW)

    # Per-output-row-offset accumulators (one per kh).
    acc = [jnp.zeros((1, HW), jnp.float32) for _ in range(K)]

    # --- Column pass: one roll per (branch, nonzero dw), masked at col edges.
    # masks_ref rows [0, K) are column masks, [K, 2K) are row masks (f32 0/1).
    for kw in range(K):
        dw = kw - P
        cmask = masks_ref[kw:kw + 1, :]             # (1, HW)
        a, b = mx, sm
        if dw:
            shift = (-dw) % HW                      # static int
            a = pltpu.roll(a, shift, axis=1)
            b = pltpu.roll(b, shift, axis=1)
        a = a * cmask
        b = b * cmask
        for kh in range(K):
            t = kh * K + kw
            # scalar (SMEM) x vector multiplies; BN scale already folded in.
            acc[kh] = acc[kh] + params_ref[t] * a + params_ref[KK + t] * b

    # --- Row pass: one roll per nonzero dh, masked at row edges.
    conv = jnp.zeros((1, HW), jnp.float32)
    for kh in range(K):
        dh = kh - P
        v = acc[kh]
        if dh:
            v = pltpu.roll(v, (-(dh * W)) % HW, axis=1)
        conv = conv + v * masks_ref[K + kh:K + kh + 1, :]

    # --- folded-BN bias + sigmoid -> spatial gate ---
    scale = jax.nn.sigmoid(conv + params_ref[2 * KK])               # (1, HW) f32

    # --- gate the input in its own dtype (broadcast over C) ---
    o_ref[0] = x * scale.astype(x.dtype)


def spatial_gate(x, conv_w, bn_gamma, bn_beta, bn_rmean, bn_rvar, eps=1e-5):
    """x: (N, C, H, W); conv_w: (1, 2, K, K). Inference-mode BN (running stats)."""
    N, C, H, W = x.shape
    HW = H * W

    # Fold BN (single output channel) into the conv weights, and fold the 1/C
    # of the channel mean into the mean-branch weights (kernel uses a sum).
    bn_scale = (bn_gamma / jnp.sqrt(bn_rvar + eps)).astype(jnp.float32)
    bn_bias = (bn_beta - bn_rmean * bn_scale).astype(jnp.float32)
    w = conv_w.reshape(2, KK).astype(jnp.float32)     # row 0: max, row 1: mean
    w_max = (w[0] * bn_scale).reshape(-1)
    w_sum = (w[1] * (bn_scale / C)).reshape(-1)
    params = jnp.concatenate(
        [w_max, w_sum, bn_bias.reshape(-1)[:1]]).astype(jnp.float32)   # (2*KK+1,)

    # Precomputed boundary masks, host-side, as 0/1 f32 multipliers:
    #   rows [0, K):  column mask for tap offset dw = kw - P
    #   rows [K, 2K): row mask    for tap offset dh = kh - P
    hw = np.arange(HW)
    h_idx, w_idx = hw // W, hw % W
    col = np.stack([((w_idx + (kw - P)) >= 0) & ((w_idx + (kw - P)) < W)
                    for kw in range(K)])
    row = np.stack([((h_idx + (kh - P)) >= 0) & ((h_idx + (kh - P)) < H)
                    for kh in range(K)])
    masks = jnp.asarray(np.concatenate([col, row]).astype(np.float32))  # (2K, HW)

    # Lane-dense layout for the big slab.
    x_flat = x.reshape(N, C, HW)

    # VMEM budget: in + out blocks double-buffered, f32 working set, headroom.
    slab_bytes = C * HW * x.dtype.itemsize
    f32_work = C * HW * 4 + 32 * HW * 4
    vmem_bytes = int(min(max(4 * slab_bytes + f32_work + (4 << 20), 16 << 20),
                         64 << 20))

    kernel = functools.partial(_spatial_gate_kernel, H=H, W=W)
    out_flat = pl.pallas_call(
        kernel,
        out_shape=jax.ShapeDtypeStruct((N, C, HW), x.dtype),
        grid_spec=pl.GridSpec(
            grid=(N,),
            in_specs=[
                pl.BlockSpec(memory_space=pltpu.MemorySpace.SMEM),   # params
                pl.BlockSpec((2 * K, HW), lambda n: (0, 0)),         # masks (VMEM)
                pl.BlockSpec((1, C, HW), lambda n: (n, 0, 0)),       # x
            ],
            out_specs=pl.BlockSpec((1, C, HW), lambda n: (n, 0, 0)),
        ),
        compiler_params=pltpu.CompilerParams(
            dimension_semantics=("parallel",),
            vmem_limit_bytes=vmem_bytes,
        ),
    )(params, masks, x_flat)
    return out_flat.reshape(N, C, H, W)


def spatial_gate_reference(x, conv_w, bn_gamma, bn_beta, bn_rmean, bn_rvar,
                           eps=1e-5):
    """Pure-JAX reference mirroring the PyTorch module (inference-mode BN)."""
    mx = jnp.max(x, axis=1, keepdims=True)
    mn = jnp.mean(x, axis=1, keepdims=True)
    xc = jnp.concatenate([mx, mn], axis=1)                            # (N,2,H,W)
    y = lax.conv_general_dilated(
        xc, conv_w, window_strides=(1, 1), padding=((P, P), (P, P)),
        dimension_numbers=("NCHW", "OIHW", "NCHW"))
    y = (y - bn_rmean) / jnp.sqrt(bn_rvar + eps) * bn_gamma + bn_beta
    scale = jax.nn.sigmoid(y)
    return x * scale


if __name__ == "__main__":
    key = jax.random.PRNGKey(0)
    kx1, kx2, kw = jax.random.split(key, 3)

    # Conv2d(2, 1, 7, bias=False) weights: kaiming-uniform-like deterministic init.
    fan_in = 2 * K * K
    bound = 1.0 / np.sqrt(fan_in)
    conv_w = jax.random.uniform(kw, (1, 2, K, K), jnp.float32,
                                minval=-bound, maxval=bound)

    # Non-trivial BatchNorm2d(1) running stats so the folding path is exercised.
    bn_gamma = jnp.float32(1.3)
    bn_beta = jnp.float32(-0.2)
    bn_rmean = jnp.float32(0.1)
    bn_rvar = jnp.float32(0.9)

    test_shapes = [(2, 4, 16, 16), (1, 8, 16, 8)]
    for shape, kx in zip(test_shapes, (kx1, kx2)):
        x = jax.random.normal(kx, shape, dtype=jnp.float32)
        out = spatial_gate(x, conv_w, bn_gamma, bn_beta, bn_rmean, bn_rvar)
        out = jax.block_until_ready(out)
        ref = spatial_gate_reference(x, conv_w, bn_gamma, bn_beta,
                                     bn_rmean, bn_rvar)
        np.testing.assert_allclose(np.asarray(out), np.asarray(ref),
                                   rtol=1e-5, atol=1e-5)

    print("KERNEL_OK")
</pallas_src>

<mosaic_0001>
module attributes {stable_mosaic.version = 11 : i64} {
  func.func @_spatial_gate_kernel(%arg0: i32, %arg1: memref<99xf32, #tpu.memory_space<smem>>, %arg2: memref<14x256xf32, #tpu.memory_space<vmem>>, %arg3: memref<1x4x256xf32, #tpu.memory_space<vmem>>, %arg4: memref<1x4x256xf32, #tpu.memory_space<vmem>>) attributes {dimension_semantics = [#tpu.dimension_semantics<parallel>], iteration_bounds = array<i64: 2>, scalar_prefetch = 0 : i64, scratch_operands = 0 : i64, tpu.core_type = #tpu.core_type<tc>, window_params = [{transform_indices = @transform_0, window_bounds = array<i64: 99>}, {pipeline_mode = #tpu.pipeline_mode<synchronous>, transform_indices = @transform_1, window_bounds = array<i64: 14, 256>}, {transform_indices = @transform_2, window_bounds = array<i64: 1, 4, 256>}, {transform_indices = @transform_3, window_bounds = array<i64: 1, 4, 256>}]} {
    %c0 = arith.constant 0 : index
    %c0_0 = arith.constant 0 : index
    %c0_1 = arith.constant 0 : index
    %0 = vector.load %arg3[%c0, %c0_0, %c0_1] : memref<1x4x256xf32, #tpu.memory_space<vmem>>, vector<1x4x256xf32>
    %1 = vector.shape_cast %0 : vector<1x4x256xf32> to vector<4x256xf32>
    %cst = arith.constant dense<0xFF800000> : vector<256xf32>
    %2 = vector.multi_reduction <maximumf>, %1, %cst [0] : vector<4x256xf32> to vector<256xf32>
    %3 = vector.shape_cast %2 : vector<256xf32> to vector<1x256xf32>
    %cst_2 = arith.constant dense<0.000000e+00> : vector<256xf32>
    %4 = vector.multi_reduction <add>, %1, %cst_2 [0] : vector<4x256xf32> to vector<256xf32>
    %5 = vector.shape_cast %4 : vector<256xf32> to vector<1x256xf32>
    %cst_3 = arith.constant 0.000000e+00 : f32
    %6 = vector.broadcast %cst_3 : f32 to vector<1x256xf32>
    %cst_4 = arith.constant 0.000000e+00 : f32
    %7 = vector.broadcast %cst_4 : f32 to vector<1x256xf32>
    %cst_5 = arith.constant 0.000000e+00 : f32
    %8 = vector.broadcast %cst_5 : f32 to vector<1x256xf32>
    %cst_6 = arith.constant 0.000000e+00 : f32
    %9 = vector.broadcast %cst_6 : f32 to vector<1x256xf32>
    %cst_7 = arith.constant 0.000000e+00 : f32
    %10 = vector.broadcast %cst_7 : f32 to vector<1x256xf32>
    %cst_8 = arith.constant 0.000000e+00 : f32
    %11 = vector.broadcast %cst_8 : f32 to vector<1x256xf32>
    %cst_9 = arith.constant 0.000000e+00 : f32
    %12 = vector.broadcast %cst_9 : f32 to vector<1x256xf32>
    %c0_10 = arith.constant 0 : index
    %c0_11 = arith.constant 0 : index
    %13 = vector.load %arg2[%c0_10, %c0_11] : memref<14x256xf32, #tpu.memory_space<vmem>>, vector<1x256xf32>
    %c3_i32 = arith.constant 3 : i32
    %14 = tpu.dynamic_rotate %3 by %c3_i32 dim 1 : vector<1x256xf32>, i32 -> vector<1x256xf32>
    %c3_i32_12 = arith.constant 3 : i32
    %15 = tpu.dynamic_rotate %5 by %c3_i32_12 dim 1 : vector<1x256xf32>, i32 -> vector<1x256xf32>
    %16 = arith.mulf %14, %13 : vector<1x256xf32>
    %17 = arith.mulf %15, %13 : vector<1x256xf32>
    %c0_13 = arith.constant 0 : index
    %18 = memref.load %arg1[%c0_13] : memref<99xf32, #tpu.memory_space<smem>>
    %19 = vector.broadcast %18 : f32 to vector<1x256xf32>
    %20 = arith.mulf %19, %16 : vector<1x256xf32>
    %21 = arith.addf %6, %20 : vector<1x256xf32>
    %c49 = arith.constant 49 : index
    %22 = memref.load %arg1[%c49] : memref<99xf32, #tpu.memory_space<smem>>
    %23 = vector.broadcast %22 : f32 to vector<1x256xf32>
    %24 = arith.mulf %23, %17 : vector<1x256xf32>
    %25 = arith.addf %21, %24 : vector<1x256xf32>
    %c7 = arith.constant 7 : index
    %26 = memref.load %arg1[%c7] : memref<99xf32, #tpu.memory_space<smem>>
    %27 = vector.broadcast %26 : f32 to vector<1x256xf32>
    %28 = arith.mulf %27, %16 : vector<1x256xf32>
    %29 = arith.addf %7, %28 : vector<1x256xf32>
    %c56 = arith.constant 56 : index
    %30 = memref.load %arg1[%c56] : memref<99xf32, #tpu.memory_space<smem>>
    %31 = vector.broadcast %30 : f32 to vector<1x256xf32>
    %32 = arith.mulf %31, %17 : vector<1x256xf32>
    %33 = arith.addf %29, %32 : vector<1x256xf32>
    %c14 = arith.constant 14 : index
    %34 = memref.load %arg1[%c14] : memref<99xf32, #tpu.memory_space<smem>>
    %35 = vector.broadcast %34 : f32 to vector<1x256xf32>
    %36 = arith.mulf %35, %16 : vector<1x256xf32>
    %37 = arith.addf %8, %36 : vector<1x256xf32>
    %c63 = arith.constant 63 : index
    %38 = memref.load %arg1[%c63] : memref<99xf32, #tpu.memory_space<smem>>
    %39 = vector.broadcast %38 : f32 to vector<1x256xf32>
    %40 = arith.mulf %39, %17 : vector<1x256xf32>
    %41 = arith.addf %37, %40 : vector<1x256xf32>
    %c21 = arith.constant 21 : index
    %42 = memref.load %arg1[%c21] : memref<99xf32, #tpu.memory_space<smem>>
    %43 = vector.broadcast %42 : f32 to vector<1x256xf32>
    %44 = arith.mulf %43, %16 : vector<1x256xf32>
    %45 = arith.addf %9, %44 : vector<1x256xf32>
    %c70 = arith.constant 70 : index
    %46 = memref.load %arg1[%c70] : memref<99xf32, #tpu.memory_space<smem>>
    %47 = vector.broadcast %46 : f32 to vector<1x256xf32>
    %48 = arith.mulf %47, %17 : vector<1x256xf32>
    %49 = arith.addf %45, %48 : vector<1x256xf32>
    %c28 = arith.constant 28 : index
    %50 = memref.load %arg1[%c28] : memref<99xf32, #tpu.memory_space<smem>>
    %51 = vector.broadcast %50 : f32 to vector<1x256xf32>
    %52 = arith.mulf %51, %16 : vector<1x256xf32>
    %53 = arith.addf %10, %52 : vector<1x256xf32>
    %c77 = arith.constant 77 : index
    %54 = memref.load %arg1[%c77] : memref<99xf32, #tpu.memory_space<smem>>
    %55 = vector.broadcast %54 : f32 to vector<1x256xf32>
    %56 = arith.mulf %55, %17 : vector<1x256xf32>
    %57 = arith.addf %53, %56 : vector<1x256xf32>
    %c35 = arith.constant 35 : index
    %58 = memref.load %arg1[%c35] : memref<99xf32, #tpu.memory_space<smem>>
    %59 = vector.broadcast %58 : f32 to vector<1x256xf32>
    %60 = arith.mulf %59, %16 : vector<1x256xf32>
    %61 = arith.addf %11, %60 : vector<1x256xf32>
    %c84 = arith.constant 84 : index
    %62 = memref.load %arg1[%c84] : memref<99xf32, #tpu.memory_space<smem>>
    %63 = vector.broadcast %62 : f32 to vector<1x256xf32>
    %64 = arith.mulf %63, %17 : vector<1x256xf32>
    %65 = arith.addf %61, %64 : vector<1x256xf32>
    %c42 = arith.constant 42 : index
    %66 = memref.load %arg1[%c42] : memref<99xf32, #tpu.memory_space<smem>>
    %67 = vector.broadcast %66 : f32 to vector<1x256xf32>
    %68 = arith.mulf %67, %16 : vector<1x256xf32>
    %69 = arith.addf %12, %68 : vector<1x256xf32>
    %c91 = arith.constant 91 : index
    %70 = memref.load %arg1[%c91] : memref<99xf32, #tpu.memory_space<smem>>
    %71 = vector.broadcast %70 : f32 to vector<1x256xf32>
    %72 = arith.mulf %71, %17 : vector<1x256xf32>
    %73 = arith.addf %69, %72 : vector<1x256xf32>
    %c1 = arith.constant 1 : index
    %c0_14 = arith.constant 0 : index
    %74 = vector.load %arg2[%c1, %c0_14] : memref<14x256xf32, #tpu.memory_space<vmem>>, vector<1x256xf32>
    %c2_i32 = arith.constant 2 : i32
    %75 = tpu.dynamic_rotate %3 by %c2_i32 dim 1 : vector<1x256xf32>, i32 -> vector<1x256xf32>
    %c2_i32_15 = arith.constant 2 : i32
    %76 = tpu.dynamic_rotate %5 by %c2_i32_15 dim 1 : vector<1x256xf32>, i32 -> vector<1x256xf32>
    %77 = arith.mulf %75, %74 : vector<1x256xf32>
    %78 = arith.mulf %76, %74 : vector<1x256xf32>
    %c1_16 = arith.constant 1 : index
    %79 = memref.load %arg1[%c1_16] : memref<99xf32, #tpu.memory_space<smem>>
    %80 = vector.broadcast %79 : f32 to vector<1x256xf32>
    %81 = arith.mulf %80, %77 : vector<1x256xf32>
    %82 = arith.addf %25, %81 : vector<1x256xf32>
    %c50 = arith.constant 50 : index
    %83 = memref.load %arg1[%c50] : memref<99xf32, #tpu.memory_space<smem>>
    %84 = vector.broadcast %83 : f32 to vector<1x256xf32>
    %85 = arith.mulf %84, %78 : vector<1x256xf32>
    %86 = arith.addf %82, %85 : vector<1x256xf32>
    %c8 = arith.constant 8 : index
    %87 = memref.load %arg1[%c8] : memref<99xf32, #tpu.memory_space<smem>>
    %88 = vector.broadcast %87 : f32 to vector<1x256xf32>
    %89 = arith.mulf %88, %77 : vector<1x256xf32>
    %90 = arith.addf %33, %89 : vector<1x256xf32>
    %c57 = arith.constant 57 : index
    %91 = memref.load %arg1[%c57] : memref<99xf32, #tpu.memory_space<smem>>
    %92 = vector.broadcast %91 : f32 to vector<1x256xf32>
    %93 = arith.mulf %92, %78 : vector<1x256xf32>
    %94 = arith.addf %90, %93 : vector<1x256xf32>
    %c15 = arith.constant 15 : index
    %95 = memref.load %arg1[%c15] : memref<99xf32, #tpu.memory_space<smem>>
    %96 = vector.broadcast %95 : f32 to vector<1x256xf32>
    %97 = arith.mulf %96, %77 : vector<1x256xf32>
    %98 = arith.addf %41, %97 : vector<1x256xf32>
    %c64 = arith.constant 64 : index
    %99 = memref.load %arg1[%c64] : memref<99xf32, #tpu.memory_space<smem>>
    %100 = vector.broadcast %99 : f32 to vector<1x256xf32>
    %101 = arith.mulf %100, %78 : vector<1x256xf32>
    %102 = arith.addf %98, %101 : vector<1x256xf32>
    %c22 = arith.constant 22 : index
    %103 = memref.load %arg1[%c22] : memref<99xf32, #tpu.memory_space<smem>>
    %104 = vector.broadcast %103 : f32 to vector<1x256xf32>
    %105 = arith.mulf %104, %77 : vector<1x256xf32>
    %106 = arith.addf %49, %105 : vector<1x256xf32>
    %c71 = arith.constant 71 : index
    %107 = memref.load %arg1[%c71] : memref<99xf32, #tpu.memory_space<smem>>
    %108 = vector.broadcast %107 : f32 to vector<1x256xf32>
    %109 = arith.mulf %108, %78 : vector<1x256xf32>
    %110 = arith.addf %106, %109 : vector<1x256xf32>
    %c29 = arith.constant 29 : index
    %111 = memref.load %arg1[%c29] : memref<99xf32, #tpu.memory_space<smem>>
    %112 = vector.broadcast %111 : f32 to vector<1x256xf32>
    %113 = arith.mulf %112, %77 : vector<1x256xf32>
    %114 = arith.addf %57, %113 : vector<1x256xf32>
    %c78 = arith.constant 78 : index
    %115 = memref.load %arg1[%c78] : memref<99xf32, #tpu.memory_space<smem>>
    %116 = vector.broadcast %115 : f32 to vector<1x256xf32>
    %117 = arith.mulf %116, %78 : vector<1x256xf32>
    %118 = arith.addf %114, %117 : vector<1x256xf32>
    %c36 = arith.constant 36 : index
    %119 = memref.load %arg1[%c36] : memref<99xf32, #tpu.memory_space<smem>>
    %120 = vector.broadcast %119 : f32 to vector<1x256xf32>
    %121 = arith.mulf %120, %77 : vector<1x256xf32>
    %122 = arith.addf %65, %121 : vector<1x256xf32>
    %c85 = arith.constant 85 : index
    %123 = memref.load %arg1[%c85] : memref<99xf32, #tpu.memory_space<smem>>
    %124 = vector.broadcast %123 : f32 to vector<1x256xf32>
    %125 = arith.mulf %124, %78 : vector<1x256xf32>
    %126 = arith.addf %122, %125 : vector<1x256xf32>
    %c43 = arith.constant 43 : index
    %127 = memref.load %arg1[%c43] : memref<99xf32, #tpu.memory_space<smem>>
    %128 = vector.broadcast %127 : f32 to vector<1x256xf32>
    %129 = arith.mulf %128, %77 : vector<1x256xf32>
    %130 = arith.addf %73, %129 : vector<1x256xf32>
    %c92 = arith.constant 92 : index
    %131 = memref.load %arg1[%c92] : memref<99xf32, #tpu.memory_space<smem>>
    %132 = vector.broadcast %131 : f32 to vector<1x256xf32>
    %133 = arith.mulf %132, %78 : vector<1x256xf32>
    %134 = arith.addf %130, %133 : vector<1x256xf32>
    %c2 = arith.constant 2 : index
    %c0_17 = arith.constant 0 : index
    %135 = vector.load %arg2[%c2, %c0_17] : memref<14x256xf32, #tpu.memory_space<vmem>>, vector<1x256xf32>
    %c1_i32 = arith.constant 1 : i32
    %136 = tpu.dynamic_rotate %3 by %c1_i32 dim 1 : vector<1x256xf32>, i32 -> vector<1x256xf32>
    %c1_i32_18 = arith.constant 1 : i32
    %137 = tpu.dynamic_rotate %5 by %c1_i32_18 dim 1 : vector<1x256xf32>, i32 -> vector<1x256xf32>
    %138 = arith.mulf %136, %135 : vector<1x256xf32>
    %139 = arith.mulf %137, %135 : vector<1x256xf32>
    %c2_19 = arith.constant 2 : index
    %140 = memref.load %arg1[%c2_19] : memref<99xf32, #tpu.memory_space<smem>>
    %141 = vector.broadcast %140 : f32 to vector<1x256xf32>
    %142 = arith.mulf %141, %138 : vector<1x256xf32>
    %143 = arith.addf %86, %142 : vector<1x256xf32>
    %c51 = arith.constant 51 : index
    %144 = memref.load %arg1[%c51] : memref<99xf32, #tpu.memory_space<smem>>
    %145 = vector.broadcast %144 : f32 to vector<1x256xf32>
    %146 = arith.mulf %145, %139 : vector<1x256xf32>
    %147 = arith.addf %143, %146 : vector<1x256xf32>
    %c9 = arith.constant 9 : index
    %148 = memref.load %arg1[%c9] : memref<99xf32, #tpu.memory_space<smem>>
    %149 = vector.broadcast %148 : f32 to vector<1x256xf32>
    %150 = arith.mulf %149, %138 : vector<1x256xf32>
    %151 = arith.addf %94, %150 : vector<1x256xf32>
    %c58 = arith.constant 58 : index
    %152 = memref.load %arg1[%c58] : memref<99xf32, #tpu.memory_space<smem>>
    %153 = vector.broadcast %152 : f32 to vector<1x256xf32>
    %154 = arith.mulf %153, %139 : vector<1x256xf32>
    %155 = arith.addf %151, %154 : vector<1x256xf32>
    %c16 = arith.constant 16 : index
    %156 = memref.load %arg1[%c16] : memref<99xf32, #tpu.memory_space<smem>>
    %157 = vector.broadcast %156 : f32 to vector<1x256xf32>
    %158 = arith.mulf %157, %138 : vector<1x256xf32>
    %159 = arith.addf %102, %158 : vector<1x256xf32>
    %c65 = arith.constant 65 : index
    %160 = memref.load %arg1[%c65] : memref<99xf32, #tpu.memory_space<smem>>
    %161 = vector.broadcast %160 : f32 to vector<1x256xf32>
    %162 = arith.mulf %161, %139 : vector<1x256xf32>
    %163 = arith.addf %159, %162 : vector<1x256xf32>
    %c23 = arith.constant 23 : index
    %164 = memref.load %arg1[%c23] : memref<99xf32, #tpu.memory_space<smem>>
    %165 = vector.broadcast %164 : f32 to vector<1x256xf32>
    %166 = arith.mulf %165, %138 : vector<1x256xf32>
    %167 = arith.addf %110, %166 : vector<1x256xf32>
    %c72 = arith.constant 72 : index
    %168 = memref.load %arg1[%c72] : memref<99xf32, #tpu.memory_space<smem>>
    %169 = vector.broadcast %168 : f32 to vector<1x256xf32>
    %170 = arith.mulf %169, %139 : vector<1x256xf32>
    %171 = arith.addf %167, %170 : vector<1x256xf32>
    %c30 = arith.constant 30 : index
    %172 = memref.load %arg1[%c30] : memref<99xf32, #tpu.memory_space<smem>>
    %173 = vector.broadcast %172 : f32 to vector<1x256xf32>
    %174 = arith.mulf %173, %138 : vector<1x256xf32>
    %175 = arith.addf %118, %174 : vector<1x256xf32>
    %c79 = arith.constant 79 : index
    %176 = memref.load %arg1[%c79] : memref<99xf32, #tpu.memory_space<smem>>
    %177 = vector.broadcast %176 : f32 to vector<1x256xf32>
    %178 = arith.mulf %177, %139 : vector<1x256xf32>
    %179 = arith.addf %175, %178 : vector<1x256xf32>
    %c37 = arith.constant 37 : index
    %180 = memref.load %arg1[%c37] : memref<99xf32, #tpu.memory_space<smem>>
    %181 = vector.broadcast %180 : f32 to vector<1x256xf32>
    %182 = arith.mulf %181, %138 : vector<1x256xf32>
    %183 = arith.addf %126, %182 : vector<1x256xf32>
    %c86 = arith.constant 86 : index
    %184 = memref.load %arg1[%c86] : memref<99xf32, #tpu.memory_space<smem>>
    %185 = vector.broadcast %184 : f32 to vector<1x256xf32>
    %186 = arith.mulf %185, %139 : vector<1x256xf32>
    %187 = arith.addf %183, %186 : vector<1x256xf32>
    %c44 = arith.constant 44 : index
    %188 = memref.load %arg1[%c44] : memref<99xf32, #tpu.memory_space<smem>>
    %189 = vector.broadcast %188 : f32 to vector<1x256xf32>
    %190 = arith.mulf %189, %138 : vector<1x256xf32>
    %191 = arith.addf %134, %190 : vector<1x256xf32>
    %c93 = arith.constant 93 : index
    %192 = memref.load %arg1[%c93] : memref<99xf32, #tpu.memory_space<smem>>
    %193 = vector.broadcast %192 : f32 to vector<1x256xf32>
    %194 = arith.mulf %193, %139 : vector<1x256xf32>
    %195 = arith.addf %191, %194 : vector<1x256xf32>
    %c3 = arith.constant 3 : index
    %c0_20 = arith.constant 0 : index
    %196 = vector.load %arg2[%c3, %c0_20] : memref<14x256xf32, #tpu.memory_space<vmem>>, vector<1x256xf32>
    %197 = arith.mulf %3, %196 : vector<1x256xf32>
    %198 = arith.mulf %5, %196 : vector<1x256xf32>
    %c3_21 = arith.constant 3 : index
    %199 = memref.load %arg1[%c3_21] : memref<99xf32, #tpu.memory_space<smem>>
    %200 = vector.broadcast %199 : f32 to vector<1x256xf32>
    %201 = arith.mulf %200, %197 : vector<1x256xf32>
    %202 = arith.addf %147, %201 : vector<1x256xf32>
    %c52 = arith.constant 52 : index
    %203 = memref.load %arg1[%c52] : memref<99xf32, #tpu.memory_space<smem>>
    %204 = vector.broadcast %203 : f32 to vector<1x256xf32>
    %205 = arith.mulf %204, %198 : vector<1x256xf32>
    %206 = arith.addf %202, %205 : vector<1x256xf32>
    %c10 = arith.constant 10 : index
    %207 = memref.load %arg1[%c10] : memref<99xf32, #tpu.memory_space<smem>>
    %208 = vector.broadcast %207 : f32 to vector<1x256xf32>
    %209 = arith.mulf %208, %197 : vector<1x256xf32>
    %210 = arith.addf %155, %209 : vector<1x256xf32>
    %c59 = arith.constant 59 : index
    %211 = memref.load %arg1[%c59] : memref<99xf32, #tpu.memory_space<smem>>
    %212 = vector.broadcast %211 : f32 to vector<1x256xf32>
    %213 = arith.mulf %212, %198 : vector<1x256xf32>
    %214 = arith.addf %210, %213 : vector<1x256xf32>
    %c17 = arith.constant 17 : index
    %215 = memref.load %arg1[%c17] : memref<99xf32, #tpu.memory_space<smem>>
    %216 = vector.broadcast %215 : f32 to vector<1x256xf32>
    %217 = arith.mulf %216, %197 : vector<1x256xf32>
    %218 = arith.addf %163, %217 : vector<1x256xf32>
    %c66 = arith.constant 66 : index
    %219 = memref.load %arg1[%c66] : memref<99xf32, #tpu.memory_space<smem>>
    %220 = vector.broadcast %219 : f32 to vector<1x256xf32>
    %221 = arith.mulf %220, %198 : vector<1x256xf32>
    %222 = arith.addf %218, %221 : vector<1x256xf32>
    %c24 = arith.constant 24 : index
    %223 = memref.load %arg1[%c24] : memref<99xf32, #tpu.memory_space<smem>>
    %224 = vector.broadcast %223 : f32 to vector<1x256xf32>
    %225 = arith.mulf %224, %197 : vector<1x256xf32>
    %226 = arith.addf %171, %225 : vector<1x256xf32>
    %c73 = arith.constant 73 : index
    %227 = memref.load %arg1[%c73] : memref<99xf32, #tpu.memory_space<smem>>
    %228 = vector.broadcast %227 : f32 to vector<1x256xf32>
    %229 = arith.mulf %228, %198 : vector<1x256xf32>
    %230 = arith.addf %226, %229 : vector<1x256xf32>
    %c31 = arith.constant 31 : index
    %231 = memref.load %arg1[%c31] : memref<99xf32, #tpu.memory_space<smem>>
    %232 = vector.broadcast %231 : f32 to vector<1x256xf32>
    %233 = arith.mulf %232, %197 : vector<1x256xf32>
    %234 = arith.addf %179, %233 : vector<1x256xf32>
    %c80 = arith.constant 80 : index
    %235 = memref.load %arg1[%c80] : memref<99xf32, #tpu.memory_space<smem>>
    %236 = vector.broadcast %235 : f32 to vector<1x256xf32>
    %237 = arith.mulf %236, %198 : vector<1x256xf32>
    %238 = arith.addf %234, %237 : vector<1x256xf32>
    %c38 = arith.constant 38 : index
    %239 = memref.load %arg1[%c38] : memref<99xf32, #tpu.memory_space<smem>>
    %240 = vector.broadcast %239 : f32 to vector<1x256xf32>
    %241 = arith.mulf %240, %197 : vector<1x256xf32>
    %242 = arith.addf %187, %241 : vector<1x256xf32>
    %c87 = arith.constant 87 : index
    %243 = memref.load %arg1[%c87] : memref<99xf32, #tpu.memory_space<smem>>
    %244 = vector.broadcast %243 : f32 to vector<1x256xf32>
    %245 = arith.mulf %244, %198 : vector<1x256xf32>
    %246 = arith.addf %242, %245 : vector<1x256xf32>
    %c45 = arith.constant 45 : index
    %247 = memref.load %arg1[%c45] : memref<99xf32, #tpu.memory_space<smem>>
    %248 = vector.broadcast %247 : f32 to vector<1x256xf32>
    %249 = arith.mulf %248, %197 : vector<1x256xf32>
    %250 = arith.addf %195, %249 : vector<1x256xf32>
    %c94 = arith.constant 94 : index
    %251 = memref.load %arg1[%c94] : memref<99xf32, #tpu.memory_space<smem>>
    %252 = vector.broadcast %251 : f32 to vector<1x256xf32>
    %253 = arith.mulf %252, %198 : vector<1x256xf32>
    %254 = arith.addf %250, %253 : vector<1x256xf32>
    %c4 = arith.constant 4 : index
    %c0_22 = arith.constant 0 : index
    %255 = vector.load %arg2[%c4, %c0_22] : memref<14x256xf32, #tpu.memory_space<vmem>>, vector<1x256xf32>
    %c255_i32 = arith.constant 255 : i32
    %256 = tpu.dynamic_rotate %3 by %c255_i32 dim 1 : vector<1x256xf32>, i32 -> vector<1x256xf32>
    %c255_i32_23 = arith.constant 255 : i32
    %257 = tpu.dynamic_rotate %5 by %c255_i32_23 dim 1 : vector<1x256xf32>, i32 -> vector<1x256xf32>
    %258 = arith.mulf %256, %255 : vector<1x256xf32>
    %259 = arith.mulf %257, %255 : vector<1x256xf32>
    %c4_24 = arith.constant 4 : index
    %260 = memref.load %arg1[%c4_24] : memref<99xf32, #tpu.memory_space<smem>>
    %261 = vector.broadcast %260 : f32 to vector<1x256xf32>
    %262 = arith.mulf %261, %258 : vector<1x256xf32>
    %263 = arith.addf %206, %262 : vector<1x256xf32>
    %c53 = arith.constant 53 : index
    %264 = memref.load %arg1[%c53] : memref<99xf32, #tpu.memory_space<smem>>
    %265 = vector.broadcast %264 : f32 to vector<1x256xf32>
    %266 = arith.mulf %265, %259 : vector<1x256xf32>
    %267 = arith.addf %263, %266 : vector<1x256xf32>
    %c11 = arith.constant 11 : index
    %268 = memref.load %arg1[%c11] : memref<99xf32, #tpu.memory_space<smem>>
    %269 = vector.broadcast %268 : f32 to vector<1x256xf32>
    %270 = arith.mulf %269, %258 : vector<1x256xf32>
    %271 = arith.addf %214, %270 : vector<1x256xf32>
    %c60 = arith.constant 60 : index
    %272 = memref.load %arg1[%c60] : memref<99xf32, #tpu.memory_space<smem>>
    %273 = vector.broadcast %272 : f32 to vector<1x256xf32>
    %274 = arith.mulf %273, %259 : vector<1x256xf32>
    %275 = arith.addf %271, %274 : vector<1x256xf32>
    %c18 = arith.constant 18 : index
    %276 = memref.load %arg1[%c18] : memref<99xf32, #tpu.memory_space<smem>>
    %277 = vector.broadcast %276 : f32 to vector<1x256xf32>
    %278 = arith.mulf %277, %258 : vector<1x256xf32>
    %279 = arith.addf %222, %278 : vector<1x256xf32>
    %c67 = arith.constant 67 : index
    %280 = memref.load %arg1[%c67] : memref<99xf32, #tpu.memory_space<smem>>
    %281 = vector.broadcast %280 : f32 to vector<1x256xf32>
    %282 = arith.mulf %281, %259 : vector<1x256xf32>
    %283 = arith.addf %279, %282 : vector<1x256xf32>
    %c25 = arith.constant 25 : index
    %284 = memref.load %arg1[%c25] : memref<99xf32, #tpu.memory_space<smem>>
    %285 = vector.broadcast %284 : f32 to vector<1x256xf32>
    %286 = arith.mulf %285, %258 : vector<1x256xf32>
    %287 = arith.addf %230, %286 : vector<1x256xf32>
    %c74 = arith.constant 74 : index
    %288 = memref.load %arg1[%c74] : memref<99xf32, #tpu.memory_space<smem>>
    %289 = vector.broadcast %288 : f32 to vector<1x256xf32>
    %290 = arith.mulf %289, %259 : vector<1x256xf32>
    %291 = arith.addf %287, %290 : vector<1x256xf32>
    %c32 = arith.constant 32 : index
    %292 = memref.load %arg1[%c32] : memref<99xf32, #tpu.memory_space<smem>>
    %293 = vector.broadcast %292 : f32 to vector<1x256xf32>
    %294 = arith.mulf %293, %258 : vector<1x256xf32>
    %295 = arith.addf %238, %294 : vector<1x256xf32>
    %c81 = arith.constant 81 : index
    %296 = memref.load %arg1[%c81] : memref<99xf32, #tpu.memory_space<smem>>
    %297 = vector.broadcast %296 : f32 to vector<1x256xf32>
    %298 = arith.mulf %297, %259 : vector<1x256xf32>
    %299 = arith.addf %295, %298 : vector<1x256xf32>
    %c39 = arith.constant 39 : index
    %300 = memref.load %arg1[%c39] : memref<99xf32, #tpu.memory_space<smem>>
    %301 = vector.broadcast %300 : f32 to vector<1x256xf32>
    %302 = arith.mulf %301, %258 : vector<1x256xf32>
    %303 = arith.addf %246, %302 : vector<1x256xf32>
    %c88 = arith.constant 88 : index
    %304 = memref.load %arg1[%c88] : memref<99xf32, #tpu.memory_space<smem>>
    %305 = vector.broadcast %304 : f32 to vector<1x256xf32>
    %306 = arith.mulf %305, %259 : vector<1x256xf32>
    %307 = arith.addf %303, %306 : vector<1x256xf32>
    %c46 = arith.constant 46 : index
    %308 = memref.load %arg1[%c46] : memref<99xf32, #tpu.memory_space<smem>>
    %309 = vector.broadcast %308 : f32 to vector<1x256xf32>
    %310 = arith.mulf %309, %258 : vector<1x256xf32>
    %311 = arith.addf %254, %310 : vector<1x256xf32>
    %c95 = arith.constant 95 : index
    %312 = memref.load %arg1[%c95] : memref<99xf32, #tpu.memory_space<smem>>
    %313 = vector.broadcast %312 : f32 to vector<1x256xf32>
    %314 = arith.mulf %313, %259 : vector<1x256xf32>
    %315 = arith.addf %311, %314 : vector<1x256xf32>
    %c5 = arith.constant 5 : index
    %c0_25 = arith.constant 0 : index
    %316 = vector.load %arg2[%c5, %c0_25] : memref<14x256xf32, #tpu.memory_space<vmem>>, vector<1x256xf32>
    %c254_i32 = arith.constant 254 : i32
    %317 = tpu.dynamic_rotate %3 by %c254_i32 dim 1 : vector<1x256xf32>, i32 -> vector<1x256xf32>
    %c254_i32_26 = arith.constant 254 : i32
    %318 = tpu.dynamic_rotate %5 by %c254_i32_26 dim 1 : vector<1x256xf32>, i32 -> vector<1x256xf32>
    %319 = arith.mulf %317, %316 : vector<1x256xf32>
    %320 = arith.mulf %318, %316 : vector<1x256xf32>
    %c5_27 = arith.constant 5 : index
    %321 = memref.load %arg1[%c5_27] : memref<99xf32, #tpu.memory_space<smem>>
    %322 = vector.broadcast %321 : f32 to vector<1x256xf32>
    %323 = arith.mulf %322, %319 : vector<1x256xf32>
    %324 = arith.addf %267, %323 : vector<1x256xf32>
    %c54 = arith.constant 54 : index
    %325 = memref.load %arg1[%c54] : memref<99xf32, #tpu.memory_space<smem>>
    %326 = vector.broadcast %325 : f32 to vector<1x256xf32>
    %327 = arith.mulf %326, %320 : vector<1x256xf32>
    %328 = arith.addf %324, %327 : vector<1x256xf32>
    %c12 = arith.constant 12 : index
    %329 = memref.load %arg1[%c12] : memref<99xf32, #tpu.memory_space<smem>>
    %330 = vector.broadcast %329 : f32 to vector<1x256xf32>
    %331 = arith.mulf %330, %319 : vector<1x256xf32>
    %332 = arith.addf %275, %331 : vector<1x256xf32>
    %c61 = arith.constant 61 : index
    %333 = memref.load %arg1[%c61] : memref<99xf32, #tpu.memory_space<smem>>
    %334 = vector.broadcast %333 : f32 to vector<1x256xf32>
    %335 = arith.mulf %334, %320 : vector<1x256xf32>
    %336 = arith.addf %332, %335 : vector<1x256xf32>
    %c19 = arith.constant 19 : index
    %337 = memref.load %arg1[%c19] : memref<99xf32, #tpu.memory_space<smem>>
    %338 = vector.broadcast %337 : f32 to vector<1x256xf32>
    %339 = arith.mulf %338, %319 : vector<1x256xf32>
    %340 = arith.addf %283, %339 : vector<1x256xf32>
    %c68 = arith.constant 68 : index
    %341 = memref.load %arg1[%c68] : memref<99xf32, #tpu.memory_space<smem>>
    %342 = vector.broadcast %341 : f32 to vector<1x256xf32>
    %343 = arith.mulf %342, %320 : vector<1x256xf32>
    %344 = arith.addf %340, %343 : vector<1x256xf32>
    %c26 = arith.constant 26 : index
    %345 = memref.load %arg1[%c26] : memref<99xf32, #tpu.memory_space<smem>>
    %346 = vector.broadcast %345 : f32 to vector<1x256xf32>
    %347 = arith.mulf %346, %319 : vector<1x256xf32>
    %348 = arith.addf %291, %347 : vector<1x256xf32>
    %c75 = arith.constant 75 : index
    %349 = memref.load %arg1[%c75] : memref<99xf32, #tpu.memory_space<smem>>
    %350 = vector.broadcast %349 : f32 to vector<1x256xf32>
    %351 = arith.mulf %350, %320 : vector<1x256xf32>
    %352 = arith.addf %348, %351 : vector<1x256xf32>
    %c33 = arith.constant 33 : index
    %353 = memref.load %arg1[%c33] : memref<99xf32, #tpu.memory_space<smem>>
    %354 = vector.broadcast %353 : f32 to vector<1x256xf32>
    %355 = arith.mulf %354, %319 : vector<1x256xf32>
    %356 = arith.addf %299, %355 : vector<1x256xf32>
    %c82 = arith.constant 82 : index
    %357 = memref.load %arg1[%c82] : memref<99xf32, #tpu.memory_space<smem>>
    %358 = vector.broadcast %357 : f32 to vector<1x256xf32>
    %359 = arith.mulf %358, %320 : vector<1x256xf32>
    %360 = arith.addf %356, %359 : vector<1x256xf32>
    %c40 = arith.constant 40 : index
    %361 = memref.load %arg1[%c40] : memref<99xf32, #tpu.memory_space<smem>>
    %362 = vector.broadcast %361 : f32 to vector<1x256xf32>
    %363 = arith.mulf %362, %319 : vector<1x256xf32>
    %364 = arith.addf %307, %363 : vector<1x256xf32>
    %c89 = arith.constant 89 : index
    %365 = memref.load %arg1[%c89] : memref<99xf32, #tpu.memory_space<smem>>
    %366 = vector.broadcast %365 : f32 to vector<1x256xf32>
    %367 = arith.mulf %366, %320 : vector<1x256xf32>
    %368 = arith.addf %364, %367 : vector<1x256xf32>
    %c47 = arith.constant 47 : index
    %369 = memref.load %arg1[%c47] : memref<99xf32, #tpu.memory_space<smem>>
    %370 = vector.broadcast %369 : f32 to vector<1x256xf32>
    %371 = arith.mulf %370, %319 : vector<1x256xf32>
    %372 = arith.addf %315, %371 : vector<1x256xf32>
    %c96 = arith.constant 96 : index
    %373 = memref.load %arg1[%c96] : memref<99xf32, #tpu.memory_space<smem>>
    %374 = vector.broadcast %373 : f32 to vector<1x256xf32>
    %375 = arith.mulf %374, %320 : vector<1x256xf32>
    %376 = arith.addf %372, %375 : vector<1x256xf32>
    %c6 = arith.constant 6 : index
    %c0_28 = arith.constant 0 : index
    %377 = vector.load %arg2[%c6, %c0_28] : memref<14x256xf32, #tpu.memory_space<vmem>>, vector<1x256xf32>
    %c253_i32 = arith.constant 253 : i32
    %378 = tpu.dynamic_rotate %3 by %c253_i32 dim 1 : vector<1x256xf32>, i32 -> vector<1x256xf32>
    %c253_i32_29 = arith.constant 253 : i32
    %379 = tpu.dynamic_rotate %5 by %c253_i32_29 dim 1 : vector<1x256xf32>, i32 -> vector<1x256xf32>
    %380 = arith.mulf %378, %377 : vector<1x256xf32>
    %381 = arith.mulf %379, %377 : vector<1x256xf32>
    %c6_30 = arith.constant 6 : index
    %382 = memref.load %arg1[%c6_30] : memref<99xf32, #tpu.memory_space<smem>>
    %383 = vector.broadcast %382 : f32 to vector<1x256xf32>
    %384 = arith.mulf %383, %380 : vector<1x256xf32>
    %385 = arith.addf %328, %384 : vector<1x256xf32>
    %c55 = arith.constant 55 : index
    %386 = memref.load %arg1[%c55] : memref<99xf32, #tpu.memory_space<smem>>
    %387 = vector.broadcast %386 : f32 to vector<1x256xf32>
    %388 = arith.mulf %387, %381 : vector<1x256xf32>
    %389 = arith.addf %385, %388 : vector<1x256xf32>
    %c13 = arith.constant 13 : index
    %390 = memref.load %arg1[%c13] : memref<99xf32, #tpu.memory_space<smem>>
    %391 = vector.broadcast %390 : f32 to vector<1x256xf32>
    %392 = arith.mulf %391, %380 : vector<1x256xf32>
    %393 = arith.addf %336, %392 : vector<1x256xf32>
    %c62 = arith.constant 62 : index
    %394 = memref.load %arg1[%c62] : memref<99xf32, #tpu.memory_space<smem>>
    %395 = vector.broadcast %394 : f32 to vector<1x256xf32>
    %396 = arith.mulf %395, %381 : vector<1x256xf32>
    %397 = arith.addf %393, %396 : vector<1x256xf32>
    %c20 = arith.constant 20 : index
    %398 = memref.load %arg1[%c20] : memref<99xf32, #tpu.memory_space<smem>>
    %399 = vector.broadcast %398 : f32 to vector<1x256xf32>
    %400 = arith.mulf %399, %380 : vector<1x256xf32>
    %401 = arith.addf %344, %400 : vector<1x256xf32>
    %c69 = arith.constant 69 : index
    %402 = memref.load %arg1[%c69] : memref<99xf32, #tpu.memory_space<smem>>
    %403 = vector.broadcast %402 : f32 to vector<1x256xf32>
    %404 = arith.mulf %403, %381 : vector<1x256xf32>
    %405 = arith.addf %401, %404 : vector<1x256xf32>
    %c27 = arith.constant 27 : index
    %406 = memref.load %arg1[%c27] : memref<99xf32, #tpu.memory_space<smem>>
    %407 = vector.broadcast %406 : f32 to vector<1x256xf32>
    %408 = arith.mulf %407, %380 : vector<1x256xf32>
    %409 = arith.addf %352, %408 : vector<1x256xf32>
    %c76 = arith.constant 76 : index
    %410 = memref.load %arg1[%c76] : memref<99xf32, #tpu.memory_space<smem>>
    %411 = vector.broadcast %410 : f32 to vector<1x256xf32>
    %412 = arith.mulf %411, %381 : vector<1x256xf32>
    %413 = arith.addf %409, %412 : vector<1x256xf32>
    %c34 = arith.constant 34 : index
    %414 = memref.load %arg1[%c34] : memref<99xf32, #tpu.memory_space<smem>>
    %415 = vector.broadcast %414 : f32 to vector<1x256xf32>
    %416 = arith.mulf %415, %380 : vector<1x256xf32>
    %417 = arith.addf %360, %416 : vector<1x256xf32>
    %c83 = arith.constant 83 : index
    %418 = memref.load %arg1[%c83] : memref<99xf32, #tpu.memory_space<smem>>
    %419 = vector.broadcast %418 : f32 to vector<1x256xf32>
    %420 = arith.mulf %419, %381 : vector<1x256xf32>
    %421 = arith.addf %417, %420 : vector<1x256xf32>
    %c41 = arith.constant 41 : index
    %422 = memref.load %arg1[%c41] : memref<99xf32, #tpu.memory_space<smem>>
    %423 = vector.broadcast %422 : f32 to vector<1x256xf32>
    %424 = arith.mulf %423, %380 : vector<1x256xf32>
    %425 = arith.addf %368, %424 : vector<1x256xf32>
    %c90 = arith.constant 90 : index
    %426 = memref.load %arg1[%c90] : memref<99xf32, #tpu.memory_space<smem>>
    %427 = vector.broadcast %426 : f32 to vector<1x256xf32>
    %428 = arith.mulf %427, %381 : vector<1x256xf32>
    %429 = arith.addf %425, %428 : vector<1x256xf32>
    %c48 = arith.constant 48 : index
    %430 = memref.load %arg1[%c48] : memref<99xf32, #tpu.memory_space<smem>>
    %431 = vector.broadcast %430 : f32 to vector<1x256xf32>
    %432 = arith.mulf %431, %380 : vector<1x256xf32>
    %433 = arith.addf %376, %432 : vector<1x256xf32>
    %c97 = arith.constant 97 : index
    %434 = memref.load %arg1[%c97] : memref<99xf32, #tpu.memory_space<smem>>
    %435 = vector.broadcast %434 : f32 to vector<1x256xf32>
    %436 = arith.mulf %435, %381 : vector<1x256xf32>
    %437 = arith.addf %433, %436 : vector<1x256xf32>
    %cst_31 = arith.constant 0.000000e+00 : f32
    %438 = vector.broadcast %cst_31 : f32 to vector<1x256xf32>
    %c48_i32 = arith.constant 48 : i32
    %439 = tpu.dynamic_rotate %389 by %c48_i32 dim 1 : vector<1x256xf32>, i32 -> vector<1x256xf32>
    %c7_32 = arith.constant 7 : index
    %c0_33 = arith.constant 0 : index
    %440 = vector.load %arg2[%c7_32, %c0_33] : memref<14x256xf32, #tpu.memory_space<vmem>>, vector<1x256xf32>
    %441 = arith.mulf %439, %440 : vector<1x256xf32>
    %442 = arith.addf %438, %441 : vector<1x256xf32>
    %c32_i32 = arith.constant 32 : i32
    %443 = tpu.dynamic_rotate %397 by %c32_i32 dim 1 : vector<1x256xf32>, i32 -> vector<1x256xf32>
    %c8_34 = arith.constant 8 : index
    %c0_35 = arith.constant 0 : index
    %444 = vector.load %arg2[%c8_34, %c0_35] : memref<14x256xf32, #tpu.memory_space<vmem>>, vector<1x256xf32>
    %445 = arith.mulf %443, %444 : vector<1x256xf32>
    %446 = arith.addf %442, %445 : vector<1x256xf32>
    %c16_i32 = arith.constant 16 : i32
    %447 = tpu.dynamic_rotate %405 by %c16_i32 dim 1 : vector<1x256xf32>, i32 -> vector<1x256xf32>
    %c9_36 = arith.constant 9 : index
    %c0_37 = arith.constant 0 : index
    %448 = vector.load %arg2[%c9_36, %c0_37] : memref<14x256xf32, #tpu.memory_space<vmem>>, vector<1x256xf32>
    %449 = arith.mulf %447, %448 : vector<1x256xf32>
    %450 = arith.addf %446, %449 : vector<1x256xf32>
    %c10_38 = arith.constant 10 : index
    %c0_39 = arith.constant 0 : index
    %451 = vector.load %arg2[%c10_38, %c0_39] : memref<14x256xf32, #tpu.memory_space<vmem>>, vector<1x256xf32>
    %452 = arith.mulf %413, %451 : vector<1x256xf32>
    %453 = arith.addf %450, %452 : vector<1x256xf32>
    %c240_i32 = arith.constant 240 : i32
    %454 = tpu.dynamic_rotate %421 by %c240_i32 dim 1 : vector<1x256xf32>, i32 -> vector<1x256xf32>
    %c11_40 = arith.constant 11 : index
    %c0_41 = arith.constant 0 : index
    %455 = vector.load %arg2[%c11_40, %c0_41] : memref<14x256xf32, #tpu.memory_space<vmem>>, vector<1x256xf32>
    %456 = arith.mulf %454, %455 : vector<1x256xf32>
    %457 = arith.addf %453, %456 : vector<1x256xf32>
    %c224_i32 = arith.constant 224 : i32
    %458 = tpu.dynamic_rotate %429 by %c224_i32 dim 1 : vector<1x256xf32>, i32 -> vector<1x256xf32>
    %c12_42 = arith.constant 12 : index
    %c0_43 = arith.constant 0 : index
    %459 = vector.load %arg2[%c12_42, %c0_43] : memref<14x256xf32, #tpu.memory_space<vmem>>, vector<1x256xf32>
    %460 = arith.mulf %458, %459 : vector<1x256xf32>
    %461 = arith.addf %457, %460 : vector<1x256xf32>
    %c208_i32 = arith.constant 208 : i32
    %462 = tpu.dynamic_rotate %437 by %c208_i32 dim 1 : vector<1x256xf32>, i32 -> vector<1x256xf32>
    %c13_44 = arith.constant 13 : index
    %c0_45 = arith.constant 0 : index
    %463 = vector.load %arg2[%c13_44, %c0_45] : memref<14x256xf32, #tpu.memory_space<vmem>>, vector<1x256xf32>
    %464 = arith.mulf %462, %463 : vector<1x256xf32>
    %465 = arith.addf %461, %464 : vector<1x256xf32>
    %c98 = arith.constant 98 : index
    %466 = memref.load %arg1[%c98] : memref<99xf32, #tpu.memory_space<smem>>
    %467 = vector.broadcast %466 : f32 to vector<1x256xf32>
    %468 = arith.addf %465, %467 : vector<1x256xf32>
    %469 = arith.negf %468 : vector<1x256xf32>
    %470 = math.exp %469 : vector<1x256xf32>
    %cst_46 = arith.constant 1.000000e+00 : f32
    %471 = vector.broadcast %cst_46 : f32 to vector<1x256xf32>
    %472 = arith.addf %471, %470 : vector<1x256xf32>
    %473 = arith.divf %471, %472 : vector<1x256xf32>
    %474 = vector.broadcast %473 : vector<1x256xf32> to vector<4x256xf32>
    %475 = arith.mulf %1, %474 : vector<4x256xf32>
    %c0_47 = arith.constant 0 : index
    %c0_48 = arith.constant 0 : index
    %c0_49 = arith.constant 0 : index
    %476 = vector.load %arg4[%c0_47, %c0_48, %c0_49] : memref<1x4x256xf32, #tpu.memory_space<vmem>>, vector<1x4x256xf32>
    %477 = vector.shape_cast %476 : vector<1x4x256xf32> to vector<4x256xf32>
    %478 = vector.shape_cast %475 : vector<4x256xf32> to vector<1x4x256xf32>
    tpu.vector_store %arg4[%c0_47, %c0_48, %c0_49], %478 {strides = array<i32>} : memref<1x4x256xf32, #tpu.memory_space<vmem>>, vector<1x4x256xf32>,
    return
  }
  func.func @transform_0(%arg0: i32) -> i32 {
    %c0_i32 = arith.constant 0 : i32
    %c0_i32_0 = arith.constant 0 : i32
    return %c0_i32 : i32
  }
  func.func @transform_1(%arg0: i32) -> (i32, i32) {
    %c0_i32 = arith.constant 0 : i32
    %c0_i32_0 = arith.constant 0 : i32
    %c0_i32_1 = arith.constant 0 : i32
    return %c0_i32, %c0_i32_0 : i32, i32
  }
  func.func @transform_2(%arg0: i32) -> (i32, i32, i32) {
    %c0_i32 = arith.constant 0 : i32
    %c0_i32_0 = arith.constant 0 : i32
    %c0_i32_1 = arith.constant 0 : i32
    return %arg0, %c0_i32, %c0_i32_0 : i32, i32, i32
  }
  func.func @transform_3(%arg0: i32) -> (i32, i32, i32) {
    %c0_i32 = arith.constant 0 : i32
    %c0_i32_0 = arith.constant 0 : i32
    %c0_i32_1 = arith.constant 0 : i32
    return %arg0, %c0_i32, %c0_i32_0 : i32, i32, i32
  }
}

</mosaic_0001>

<llo_original>
// kernel: tpu_custom_call.1
$region0: #{tpu_custom_call.1}
  #allocation0 [shape = 'u32[]', space=smem, size = 0x4, offset = 0x4, fixed_abs, tag = 'smem constant byte address 0x4 - core index']
  #allocation1 [shape = 'u32[144,128]{1,0:T(1,128)}', space=vmem, size = 0x12000, scoped, tag = 'internal scratch']
  %s0 = inlined_call_operand.hbm [shape: f32[99], index: 0, kind: input, shape index: {}]
  %s1 = inlined_call_operand.hbm [shape: f32[14,256], index: 1, kind: input, shape index: {}]
  %s2 = inlined_call_operand.hbm [shape: f32[2,4,256], index: 2, kind: input, shape index: {}]
  %s3 = inlined_call_operand.hbm [shape: f32[2,4,256], index: 3, kind: output, shape index: {}]
  %s4 = sld [smem:[#allocation0]]
  $region57: #{tpu_custom_call.1} parent=0
    _
  %s6 = ssub.s32 1, %s4
  %s7 = scalar_select 0, %s6, %s4
  $region1: #{tpu_custom_call.1} parent=0
    #allocation2 [shape = 'u8[512]{0}', space=smem, size = 0x200, scoped, tag = 'input window, operand 0, single buffered']
    #allocation3 [shape = 's32[2]{0}', space=sflag, size = 0x8, scoped, tag = 'scoped memory for tpu_custom_call.1']
    #allocation4 [shape = 's32[2]{0}', space=sflag, size = 0x8, scoped, tag = 'scoped memory for tpu_custom_call.1']
    #allocation5 [shape = 's32[2]{0}', space=sflag, size = 0x8, scoped, tag = 'scoped memory for tpu_custom_call.1']
    #allocation6 [shape = 'u8[16384]{0}', space=vmem, size = 0x4000, scoped, tag = 'input window, operand 1, single buffered']
    #allocation7 [shape = 'u8[8192]{0}', space=vmem, size = 0x2000, scoped, tag = 'input window, operand 2']
    #allocation8 [shape = 's32[2]{0}', space=sflag, size = 0x8, scoped, tag = 'scoped memory for tpu_custom_call.1']
    #allocation9 [shape = 'u8[8192]{0}', space=vmem, size = 0x2000, scoped, tag = 'output window, operand 0']
    %8 = vsyncpa [#allocation5], 0
    %9 = vsyncpa [#allocation3], 0
    %10 = vsyncpa [#allocation8], 0
    %s11 = scalar_lea.sflag [#allocation8], 1
    %12 = vsyncpa %s11, 0
    %13 = vsyncpa [#allocation4], 0
    %s14 = scalar_lea.sflag [#allocation4], 1
    %15 = vsyncpa %s14, 0
    loop: start=0, step=1, limit=4
    $region2: #{tpu_custom_call.1} parent=1 // loop_pre_header
      _
    $region3: #{tpu_custom_call.1} parent=1 // loop_header
      %s17 = sphi 0, %s21
      %p18 = scmp.ge.s32.totalorder %s17, 4
      %s25 = sphi 0, %s25
      %s27 = sphi 0, %s25
      %s28 = sphi 0, %s27
      %s42 = sphi 0, %s28
      %s46 = sphi 0, %s46
      %s48 = sphi 0, %s46
      %s49 = sphi 0, %s48
      %s63 = sphi 0, %s49
      %s69 = sphi 0, %s71
      %s72 = sphi 0, %s69
      %s73 = sphi 0, %s72
      %s89 = sphi 0, %s73
      %s95 = sphi 0, %s97
      %s98 = sphi 0, %s95
      %s99 = sphi 0, %s98
      %s115 = sphi 0, %s99
    $region4: #{tpu_custom_call.1} parent=1 // loop_header_branch
      %20 = sbr.rel (%p18) target = $region8
    $region5: #{tpu_custom_call.1} parent=1 // loop_body
      %s22 = ssub.s32 %s17, 1
      %s23 = ssub.s32 %s17, 2
      %s24 = sadd.s32 %s17, 1
      %s26 = sadd.s32 %s25, 1
      %p29 = scmp.eq.s32.totalorder %s17, 1
      %p30 = scmp.ne.s32.totalorder %s25, %s27
      %p31 = scmp.eq.s32.totalorder %s17, 0
      %p32 = por %p30, %p31
      %p33 = scmp.ne.s32.totalorder %s25, %s27
      %p34 = scmp.eq.s32.totalorder %s22, 1
      %p35 = por %p33, %p34
      %p36 = scmp.ne.s32.totalorder %s27, %s28
      %p37 = scmp.eq.s32.totalorder %s22, 0
      %p38 = por %p36, %p37
      %p39 = scmp.ne.s32.totalorder %s27, %s28
      %p40 = scmp.eq.s32.totalorder %s23, 1
      %p41 = por %p39, %p40
      %p43 = scmp.ne.s32.totalorder %s28, %s42
      %p44 = scmp.eq.s32.totalorder %s23, 0
      %p45 = por %p43, %p44
      %s47 = sadd.s32 %s46, 1
      %p50 = scmp.eq.s32.totalorder %s17, 1
      %p51 = scmp.ne.s32.totalorder %s46, %s48
      %p52 = scmp.eq.s32.totalorder %s17, 0
      %p53 = por %p51, %p52
      %p54 = scmp.ne.s32.totalorder %s46, %s48
      %p55 = scmp.eq.s32.totalorder %s22, 1
      %p56 = por %p54, %p55
      %p57 = scmp.ne.s32.totalorder %s48, %s49
      %p58 = scmp.eq.s32.totalorder %s22, 0
      %p59 = por %p57, %p58
      %p60 = scmp.ne.s32.totalorder %s48, %s49
      %p61 = scmp.eq.s32.totalorder %s23, 1
      %p62 = por %p60, %p61
      %p64 = scmp.ne.s32.totalorder %s49, %s63
      %p65 = scmp.eq.s32.totalorder %s23, 0
      %p66 = por %p64, %p65
      %s67 = ssub.s32 %s17, %s24
      %p68 = scmp.eq.s32.totalorder %s67, 0
      %s70 = sadd.s32 %s69, 1
      %s71 = scalar_select %p68, %s69, %s70
      %p74 = pneg %p68
      %p75 = scmp.eq.s32.totalorder %s17, 1
      %p76 = por %p74, %p75
      %p77 = scmp.ne.s32.totalorder %s69, %s72
      %p78 = scmp.eq.s32.totalorder %s17, 0
      %p79 = por %p77, %p78
      %p80 = scmp.ne.s32.totalorder %s69, %s72
      %p81 = scmp.eq.s32.totalorder %s22, 1
      %p82 = por %p80, %p81
      %p83 = scmp.ne.s32.totalorder %s72, %s73
      %p84 = scmp.eq.s32.totalorder %s22, 0
      %p85 = por %p83, %p84
      %p86 = scmp.ne.s32.totalorder %s72, %s73
      %p87 = scmp.eq.s32.totalorder %s23, 1
      %p88 = por %p86, %p87
      %p90 = scmp.ne.s32.totalorder %s73, %s89
      %p91 = scmp.eq.s32.totalorder %s23, 0
      %p92 = por %p90, %p91
      %s93 = ssub.s32 %s17, %s24
      %p94 = scmp.eq.s32.totalorder %s93, 0
      %s96 = sadd.s32 %s95, 1
      %s97 = scalar_select %p94, %s95, %s96
      %p100 = pneg %p94
      %p101 = scmp.eq.s32.totalorder %s17, 1
      %p102 = por %p100, %p101
      %p103 = scmp.ne.s32.totalorder %s95, %s98
      %p104 = scmp.eq.s32.totalorder %s17, 0
      %p105 = por %p103, %p104
      %p106 = scmp.ne.s32.totalorder %s95, %s98
      %p107 = scmp.eq.s32.totalorder %s22, 1
      %p108 = por %p106, %p107
      %p109 = scmp.ne.s32.totalorder %s98, %s99
      %p110 = scmp.eq.s32.totalorder %s22, 0
      %p111 = por %p109, %p110
      %p112 = scmp.ne.s32.totalorder %s98, %s99
      %p113 = scmp.eq.s32.totalorder %s23, 1
      %p114 = por %p112, %p113
      %p116 = scmp.ne.s32.totalorder %s99, %s115
      %p117 = scmp.eq.s32.totalorder %s23, 0
      %p118 = por %p116, %p117
      %p119 = scmp.le.s32.totalorder 1, %s17
      %p120 = scmp.lt.s32.totalorder %s17, 3
      %p121 = pnand %p119, %p120
      %p122 = pneg %p121
      // Predicated region
      $region9: #{tpu_custom_call.1} parent=5 // pred_check
        _
      $region10: #{tpu_custom_call.1} parent=5 // pred_check_branch
        %124 = sbr.rel (%p121) target = $region12
      $region11: #{tpu_custom_call.1} parent=5 // pred_region
        %s125 = ssub.s32 %s17, 1
        // Predicated region
        $region13: #{tpu_custom_call.1} parent=11 // pred_check
          %p126 = pneg %p38
        $region14: #{tpu_custom_call.1} parent=11 // pred_check_branch
          %128 = sbr.rel (%p126) target = $region16
        $region15: #{tpu_custom_call.1} parent=11 // pred_region
          %s130 = ssub.s32 16, 16
          %131 = vsyncadd [#allocation5], %s130
          %134 = dma.hbm_to_smem %s0, 16, [#allocation2], [#allocation5]
        $region16: #{tpu_custom_call.1} parent=11 // pred_fallthru
          _
        // Predicated region
        $region17: #{tpu_custom_call.1} parent=11 // pred_check
          %p135 = pneg %p59
        $region18: #{tpu_custom_call.1} parent=11 // pred_check_branch
          %137 = sbr.rel (%p135) target = $region20
        $region19: #{tpu_custom_call.1} parent=11 // pred_region
          %s139 = ssub.s32 512, 512
          %140 = vsyncadd [#allocation3], %s139
          %s141 = sshll.u32 [#allocation6], 4
          %s142 = int_to_ptr.vmem [resolvable:$true] %s141
          %147 = dma.hbm_to_vmem [thread:$0]  %s1, 512, %s142, [#allocation3], 256, 256, 16
        $region20: #{tpu_custom_call.1} parent=11 // pred_fallthru
          _
      $region12: #{tpu_custom_call.1} parent=5 // pred_fallthru
        _
      %p148 = scmp.lt.s32.totalorder %s17, 2
      // Predicated region
      $region21: #{tpu_custom_call.1} parent=5 // pred_check
        %p149 = pneg %p148
      $region22: #{tpu_custom_call.1} parent=5 // pred_check_branch
        %151 = sbr.rel (%p149) target = $region24
      $region23: #{tpu_custom_call.1} parent=5 // pred_region
        // Predicated region
        $region25: #{tpu_custom_call.1} parent=23 // pred_check
          %p152 = pneg %p79
        $region26: #{tpu_custom_call.1} parent=23 // pred_check_branch
          %154 = sbr.rel (%p152) target = $region28
        $region27: #{tpu_custom_call.1} parent=23 // pred_region
          %s155 = sand.u32 %s69, 1
          %s156 = scalar_lea.sflag [#allocation8], %s155
          %s157 = sand.u32 %s69, 1
          %s158 = smul.addr %s157, 8
          %s159 = scalar_lea.vmem [#allocation7], %s158
          %s161 = ssub.s32 128, 128
          %162 = vsyncadd %s156, %s161
          %s163 = smul.addr %s17, 2
          %s164 = smul.addr %s163, 64
          %s165 = scalar_lea.hbm %s2, %s164
          %s167 = sshll.u32 %s159, 4
          %s168 = int_to_ptr.vmem [resolvable:$true] %s167
          %170 = dma.hbm_to_vmem [thread:$0]  %s165, 128, %s168, %s156
        $region28: #{tpu_custom_call.1} parent=23 // pred_fallthru
          _
      $region24: #{tpu_custom_call.1} parent=5 // pred_fallthru
        _
      %p171 = scmp.le.s32.totalorder 1, %s17
      %p172 = scmp.lt.s32.totalorder %s17, 3
      %p173 = pnand %p171, %p172
      %p174 = pneg %p173
      // Predicated region
      $region29: #{tpu_custom_call.1} parent=5 // pred_check
        _
      $region30: #{tpu_custom_call.1} parent=5 // pred_check_branch
        %176 = sbr.rel (%p173) target = $region32
      $region31: #{tpu_custom_call.1} parent=5 // pred_region
        %s177 = ssub.s32 %s17, 1
        // Predicated region
        $region33: #{tpu_custom_call.1} parent=31 // pred_check
          %p178 = pneg %p38
        $region34: #{tpu_custom_call.1} parent=31 // pred_check_branch
          %180 = sbr.rel (%p178) target = $region36
        $region35: #{tpu_custom_call.1} parent=31 // pred_region
          %181 = dma.done [#allocation5], 16
        $region36: #{tpu_custom_call.1} parent=31 // pred_fallthru
          _
        // Predicated region
        $region37: #{tpu_custom_call.1} parent=31 // pred_check
          %p182 = pneg %p59
        $region38: #{tpu_custom_call.1} parent=31 // pred_check_branch
          %184 = sbr.rel (%p182) target = $region40
        $region39: #{tpu_custom_call.1} parent=31 // pred_region
          %185 = dma.done [#allocation3], 512
        $region40: #{tpu_custom_call.1} parent=31 // pred_fallthru
          _
        %s186 = sand.u32 %s72, 1
        %s187 = scalar_lea.sflag [#allocation8], %s186
        %s188 = sand.u32 %s72, 1
        %s189 = smul.addr %s188, 8
        %s190 = scalar_lea.vmem [#allocation7], %s189
        // Predicated region
        $region41: #{tpu_custom_call.1} parent=31 // pred_check
          %p191 = pneg %p85
        $region42: #{tpu_custom_call.1} parent=31 // pred_check_branch
          %193 = sbr.rel (%p191) target = $region44
        $region43: #{tpu_custom_call.1} parent=31 // pred_region
          %194 = dma.done %s187, 128
        $region44: #{tpu_custom_call.1} parent=31 // pred_fallthru
          _
        %195 = sfence
        %p196 = pneg %p38
        %p197 = pneg %p35
        %p198 = pneg %p59
        %p199 = pneg %p56
        %s200 = sand.u32 %s72, 1
        %s201 = scalar_lea.sflag [#allocation8], %s200
        %s202 = sand.u32 %s72, 1
        %s203 = smul.addr %s202, 8
        %s204 = scalar_lea.vmem [#allocation7], %s203
        %p205 = pneg %p85
        %p206 = pneg %p82
        %p207 = pneg %p111
        %p208 = pneg %p108
        %s209 = sand.u32 %s98, 1
        %s210 = scalar_lea.sflag [#allocation4], %s209
        %s211 = sand.u32 %s98, 1
        %s212 = smul.addr %s211, 8
        %s213 = scalar_lea.vmem [#allocation9], %s212
        %v214 = vld [vmem:[%s190] sm:$0xff]
        %v216 = vcombine.high %v214, %v214
        %vm218 = vcmask 1043456
        %v219 = vsel %vm218, %v214, -inf
        %v220 = vrot.slane %v219, 4
        %v221 = vmax.f32 %v219, %v220
        %v222 = vrot.slane %v221, 2
        %v223 = vmax.f32 %v221, %v222
        %v224 = vrot.slane %v223, 1
        %v225 = vmax.f32 %v223, %v224
        %v226 = vsel %vm218, %v216, -inf
        %v227 = vrot.slane %v226, 4
        %v228 = vmax.f32 %v226, %v227
        %v229 = vrot.slane %v228, 2
        %v230 = vmax.f32 %v228, %v229
        %v231 = vrot.slane %v230, 1
        %v232 = vmax.f32 %v230, %v231
        %v233 = vsel %vm218, %v214, 0.0
        %v234 = vrot.slane %v233, 4
        %v235 = vadd.f32 %v233, %v234
        %v236 = vrot.slane %v235, 2
        %v237 = vadd.f32 %v235, %v236
        %v238 = vrot.slane %v237, 1
        %v239 = vadd.f32 %v237, %v238
        %v240 = vsel %vm218, %v216, 0.0
        %v241 = vrot.slane %v240, 4
        %v242 = vadd.f32 %v240, %v241
        %v243 = vrot.slane %v242, 2
        %v244 = vadd.f32 %v242, %v243
        %v245 = vrot.slane %v244, 1
        %v246 = vadd.f32 %v244, %v245
        %v247 = vld [vmem:[#allocation6] ss:$8 sm:$0x3]
        %248 = vrot.lane.b32.xlu0 %v225, 3
        %v249 = vpop.permute.xlu0 %248
        %250 = vrot.lane.b32.xlu0 %v232, 3
        %v251 = vpop.permute.xlu0 %250
        %v252 = vlaneseq
        %v253 = vand.u32 %v252, 127
        %vm254 = vcmp.lt.s32.totalorder %v253, 3
        %v255 = vsel %vm254, %v249, %v251
        %v256 = vsel %vm254, %v251, %v249
        %257 = vrot.lane.b32.xlu0 %v239, 3
        %v258 = vpop.permute.xlu0 %257
        %259 = vrot.lane.b32.xlu0 %v246, 3
        %v260 = vpop.permute.xlu0 %259
        %v261 = vsel %vm254, %v258, %v260
        %v262 = vsel %vm254, %v260, %v258
        %v264 = vlaneseq
        %v265 = vshrl.u32 %v264, 7
        %v266 = vsub.s32 0, %v265
        %v267 = vrot.slane %v247, %v266
        %v268 = vlaneseq
        %v269 = vshrl.u32 %v268, 7
        %v270 = vsub.s32 1, %v269
        %v271 = vrot.slane %v247, %v270
        %v274 = vmul.f32 %v256, %v267
        %v275 = vmul.f32 %v255, %v271
        %v276 = vmul.f32 %v262, %v267
        %v277 = vmul.f32 %v261, %v271
        %s278 = sld [smem:[#allocation2]]
        %v279 = vstv %s278
        %v280 = vmul.f32 %v279, %v274
        %v281 = vmul.f32 %v279, %v275
        %v282 = vadd.f32 %v280, 0.0
        %v283 = vadd.f32 %v281, 0.0
        %s284 = sld [smem:[#allocation2 + $0x31]]
        %v285 = vstv %s284
        %v286 = vmul.f32 %v285, %v276
        %v287 = vmul.f32 %v285, %v277
        %v288 = vadd.f32 %v282, %v286
        %v289 = vadd.f32 %v283, %v287
        %s290 = sld [smem:[#allocation2 + $0x7]]
        %v291 = vstv %s290
        %v292 = vmul.f32 %v291, %v274
        %v293 = vmul.f32 %v291, %v275
        %v294 = vadd.f32 %v292, 0.0
        %v295 = vadd.f32 %v293, 0.0
        %s296 = sld [smem:[#allocation2 + $0x38]]
        %v297 = vstv %s296
        %v298 = vmul.f32 %v297, %v276
        %v299 = vmul.f32 %v297, %v277
        %v300 = vadd.f32 %v294, %v298
        %v301 = vadd.f32 %v295, %v299
        %s302 = sld [smem:[#allocation2 + $0xe]]
        %v303 = vstv %s302
        %v304 = vmul.f32 %v303, %v274
        %v305 = vmul.f32 %v303, %v275
        %v306 = vadd.f32 %v304, 0.0
        %v307 = vadd.f32 %v305, 0.0
        %s308 = sld [smem:[#allocation2 + $0x3f]]
        %v309 = vstv %s308
        %v310 = vmul.f32 %v309, %v276
        %v311 = vmul.f32 %v309, %v277
        %v312 = vadd.f32 %v306, %v310
        %v313 = vadd.f32 %v307, %v311
        %s314 = sld [smem:[#allocation2 + $0x15]]
        %v315 = vstv %s314
        %v316 = vmul.f32 %v315, %v274
        %v317 = vmul.f32 %v315, %v275
        %v318 = vadd.f32 %v316, 0.0
        %v319 = vadd.f32 %v317, 0.0
        %s320 = sld [smem:[#allocation2 + $0x46]]
        %v321 = vstv %s320
        %v322 = vmul.f32 %v321, %v276
        %v323 = vmul.f32 %v321, %v277
        %v324 = vadd.f32 %v318, %v322
        %v325 = vadd.f32 %v319, %v323
        %s326 = sld [smem:[#allocation2 + $0x1c]]
        %v327 = vstv %s326
        %v328 = vmul.f32 %v327, %v274
        %v329 = vmul.f32 %v327, %v275
        %v330 = vadd.f32 %v328, 0.0
        %v331 = vadd.f32 %v329, 0.0
        %s332 = sld [smem:[#allocation2 + $0x4d]]
        %v333 = vstv %s332
        %v334 = vmul.f32 %v333, %v276
        %v335 = vmul.f32 %v333, %v277
        %v336 = vadd.f32 %v330, %v334
        %v337 = vadd.f32 %v331, %v335
        %s338 = sld [smem:[#allocation2 + $0x23]]
        %v339 = vstv %s338
        %v340 = vmul.f32 %v339, %v274
        %v341 = vmul.f32 %v339, %v275
        %v342 = vadd.f32 %v340, 0.0
        %v343 = vadd.f32 %v341, 0.0
        %s344 = sld [smem:[#allocation2 + $0x54]]
        %v345 = vstv %s344
        %v346 = vmul.f32 %v345, %v276
        %v347 = vmul.f32 %v345, %v277
        %v348 = vadd.f32 %v342, %v346
        %v349 = vadd.f32 %v343, %v347
        %s350 = sld [smem:[#allocation2 + $0x2a]]
        %v351 = vstv %s350
        %v352 = vmul.f32 %v351, %v274
        %v353 = vmul.f32 %v351, %v275
        %v354 = vadd.f32 %v352, 0.0
        %v355 = vadd.f32 %v353, 0.0
        %s356 = sld [smem:[#allocation2 + $0x5b]]
        %v357 = vstv %s356
        %v358 = vmul.f32 %v357, %v276
        %v359 = vmul.f32 %v357, %v277
        %v360 = vadd.f32 %v354, %v358
        %v361 = vadd.f32 %v355, %v359
        %s362 = scalar_lea.vmem [#allocation6], 1
        %v363 = vld [vmem:[%s362] ss:$8 sm:$0x3]
        %364 = vrot.lane.b32.xlu0 %v225, 2
        %v365 = vpop.permute.xlu0 %364
        %366 = vrot.lane.b32.xlu0 %v232, 2
        %v367 = vpop.permute.xlu0 %366
        %vm368 = vcmp.lt.s32.totalorder %v253, 2
        %v369 = vsel %vm368, %v365, %v367
        %v370 = vsel %vm368, %v367, %v365
        %371 = vrot.lane.b32.xlu0 %v239, 2
        %v372 = vpop.permute.xlu0 %371
        %373 = vrot.lane.b32.xlu0 %v246, 2
        %v374 = vpop.permute.xlu0 %373
        %v375 = vsel %vm368, %v372, %v374
        %v376 = vsel %vm368, %v374, %v372
        %v378 = vlaneseq
        %v379 = vshrl.u32 %v378, 7
        %v380 = vsub.s32 0, %v379
        %v381 = vrot.slane %v363, %v380
        %v382 = vlaneseq
        %v383 = vshrl.u32 %v382, 7
        %v384 = vsub.s32 1, %v383
        %v385 = vrot.slane %v363, %v384
        %v388 = vmul.f32 %v370, %v381
        %v389 = vmul.f32 %v369, %v385
        %v390 = vmul.f32 %v376, %v381
        %v391 = vmul.f32 %v375, %v385
        %s392 = sld [smem:[#allocation2 + $0x1]]
        %v393 = vstv %s392
        %v394 = vmul.f32 %v393, %v388
        %v395 = vmul.f32 %v393, %v389
        %v396 = vadd.f32 %v288, %v394
        %v397 = vadd.f32 %v289, %v395
        %s398 = sld [smem:[#allocation2 + $0x32]]
        %v399 = vstv %s398
        %v400 = vmul.f32 %v399, %v390
        %v401 = vmul.f32 %v399, %v391
        %v402 = vadd.f32 %v396, %v400
        %v403 = vadd.f32 %v397, %v401
        %s404 = sld [smem:[#allocation2 + $0x8]]
        %v405 = vstv %s404
        %v406 = vmul.f32 %v405, %v388
        %v407 = vmul.f32 %v405, %v389
        %v408 = vadd.f32 %v300, %v406
        %v409 = vadd.f32 %v301, %v407
        %s410 = sld [smem:[#allocation2 + $0x39]]
        %v411 = vstv %s410
        %v412 = vmul.f32 %v411, %v390
        %v413 = vmul.f32 %v411, %v391
        %v414 = vadd.f32 %v408, %v412
        %v415 = vadd.f32 %v409, %v413
        %s416 = sld [smem:[#allocation2 + $0xf]]
        %v417 = vstv %s416
        %v418 = vmul.f32 %v417, %v388
        %v419 = vmul.f32 %v417, %v389
        %v420 = vadd.f32 %v312, %v418
        %v421 = vadd.f32 %v313, %v419
        %s422 = sld [smem:[#allocation2 + $0x40]]
        %v423 = vstv %s422
        %v424 = vmul.f32 %v423, %v390
        %v425 = vmul.f32 %v423, %v391
        %v426 = vadd.f32 %v420, %v424
        %v427 = vadd.f32 %v421, %v425
        %s428 = sld [smem:[#allocation2 + $0x16]]
        %v429 = vstv %s428
        %v430 = vmul.f32 %v429, %v388
        %v431 = vmul.f32 %v429, %v389
        %v432 = vadd.f32 %v324, %v430
        %v433 = vadd.f32 %v325, %v431
        %s434 = sld [smem:[#allocation2 + $0x47]]
        %v435 = vstv %s434
        %v436 = vmul.f32 %v435, %v390
        %v437 = vmul.f32 %v435, %v391
        %v438 = vadd.f32 %v432, %v436
        %v439 = vadd.f32 %v433, %v437
        %s440 = sld [smem:[#allocation2 + $0x1d]]
        %v441 = vstv %s440
        %v442 = vmul.f32 %v441, %v388
        %v443 = vmul.f32 %v441, %v389
        %v444 = vadd.f32 %v336, %v442
        %v445 = vadd.f32 %v337, %v443
        %s446 = sld [smem:[#allocation2 + $0x4e]]
        %v447 = vstv %s446
        %v448 = vmul.f32 %v447, %v390
        %v449 = vmul.f32 %v447, %v391
        %v450 = vadd.f32 %v444, %v448
        %v451 = vadd.f32 %v445, %v449
        %s452 = sld [smem:[#allocation2 + $0x24]]
        %v453 = vstv %s452
        %v454 = vmul.f32 %v453, %v388
        %v455 = vmul.f32 %v453, %v389
        %v456 = vadd.f32 %v348, %v454
        %v457 = vadd.f32 %v349, %v455
        %s458 = sld [smem:[#allocation2 + $0x55]]
        %v459 = vstv %s458
        %v460 = vmul.f32 %v459, %v390
        %v461 = vmul.f32 %v459, %v391
        %v462 = vadd.f32 %v456, %v460
        %v463 = vadd.f32 %v457, %v461
        %s464 = sld [smem:[#allocation2 + $0x2b]]
        %v465 = vstv %s464
        %v466 = vmul.f32 %v465, %v388
        %v467 = vmul.f32 %v465, %v389
        %v468 = vadd.f32 %v360, %v466
        %v469 = vadd.f32 %v361, %v467
        %s470 = sld [smem:[#allocation2 + $0x5c]]
        %v471 = vstv %s470
        %v472 = vmul.f32 %v471, %v390
        %v473 = vmul.f32 %v471, %v391
        %v474 = vadd.f32 %v468, %v472
        %v475 = vadd.f32 %v469, %v473
        %s476 = scalar_lea.vmem [#allocation6], 2
        %v477 = vld [vmem:[%s476] ss:$8 sm:$0x3]
        %478 = vrot.lane.b32.xlu0 %v225, 1
        %v479 = vpop.permute.xlu0 %478
        %480 = vrot.lane.b32.xlu0 %v232, 1
        %v481 = vpop.permute.xlu0 %480
        %vm482 = vcmp.lt.s32.totalorder %v253, 1
        %v483 = vsel %vm482, %v479, %v481
        %v484 = vsel %vm482, %v481, %v479
        %485 = vrot.lane.b32.xlu0 %v239, 1
        %v486 = vpop.permute.xlu0 %485
        %487 = vrot.lane.b32.xlu0 %v246, 1
        %v488 = vpop.permute.xlu0 %487
        %v489 = vsel %vm482, %v486, %v488
        %v490 = vsel %vm482, %v488, %v486
        %v492 = vlaneseq
        %v493 = vshrl.u32 %v492, 7
        %v494 = vsub.s32 0, %v493
        %v495 = vrot.slane %v477, %v494
        %v496 = vlaneseq
        %v497 = vshrl.u32 %v496, 7
        %v498 = vsub.s32 1, %v497
        %v499 = vrot.slane %v477, %v498
        %v502 = vmul.f32 %v484, %v495
        %v503 = vmul.f32 %v483, %v499
        %v504 = vmul.f32 %v490, %v495
        %v505 = vmul.f32 %v489, %v499
        %s506 = sld [smem:[#allocation2 + $0x2]]
        %v507 = vstv %s506
        %v508 = vmul.f32 %v507, %v502
        %v509 = vmul.f32 %v507, %v503
        %v510 = vadd.f32 %v402, %v508
        %v511 = vadd.f32 %v403, %v509
        %s512 = sld [smem:[#allocation2 + $0x33]]
        %v513 = vstv %s512
        %v514 = vmul.f32 %v513, %v504
        %v515 = vmul.f32 %v513, %v505
        %v516 = vadd.f32 %v510, %v514
        %v517 = vadd.f32 %v511, %v515
        %s518 = sld [smem:[#allocation2 + $0x9]]
        %v519 = vstv %s518
        %v520 = vmul.f32 %v519, %v502
        %v521 = vmul.f32 %v519, %v503
        %v522 = vadd.f32 %v414, %v520
        %v523 = vadd.f32 %v415, %v521
        %s524 = sld [smem:[#allocation2 + $0x3a]]
        %v525 = vstv %s524
        %v526 = vmul.f32 %v525, %v504
        %v527 = vmul.f32 %v525, %v505
        %v528 = vadd.f32 %v522, %v526
        %v529 = vadd.f32 %v523, %v527
        %s530 = sld [smem:[#allocation2 + $0x10]]
        %v531 = vstv %s530
        %v532 = vmul.f32 %v531, %v502
        %v533 = vmul.f32 %v531, %v503
        %v534 = vadd.f32 %v426, %v532
        %v535 = vadd.f32 %v427, %v533
        %s536 = sld [smem:[#allocation2 + $0x41]]
        %v537 = vstv %s536
        %v538 = vmul.f32 %v537, %v504
        %v539 = vmul.f32 %v537, %v505
        %v540 = vadd.f32 %v534, %v538
        %v541 = vadd.f32 %v535, %v539
        %s542 = sld [smem:[#allocation2 + $0x17]]
        %v543 = vstv %s542
        %v544 = vmul.f32 %v543, %v502
        %v545 = vmul.f32 %v543, %v503
        %v546 = vadd.f32 %v438, %v544
        %v547 = vadd.f32 %v439, %v545
        %s548 = sld [smem:[#allocation2 + $0x48]]
        %v549 = vstv %s548
        %v550 = vmul.f32 %v549, %v504
        %v551 = vmul.f32 %v549, %v505
        %v552 = vadd.f32 %v546, %v550
        %v553 = vadd.f32 %v547, %v551
        %s554 = sld [smem:[#allocation2 + $0x1e]]
        %v555 = vstv %s554
        %v556 = vmul.f32 %v555, %v502
        %v557 = vmul.f32 %v555, %v503
        %v558 = vadd.f32 %v450, %v556
        %v559 = vadd.f32 %v451, %v557
        %s560 = sld [smem:[#allocation2 + $0x4f]]
        %v561 = vstv %s560
        %v562 = vmul.f32 %v561, %v504
        %v563 = vmul.f32 %v561, %v505
        %v564 = vadd.f32 %v558, %v562
        %v565 = vadd.f32 %v559, %v563
        %s566 = sld [smem:[#allocation2 + $0x25]]
        %v567 = vstv %s566
        %v568 = vmul.f32 %v567, %v502
        %v569 = vmul.f32 %v567, %v503
        %v570 = vadd.f32 %v462, %v568
        %v571 = vadd.f32 %v463, %v569
        %s572 = sld [smem:[#allocation2 + $0x56]]
        %v573 = vstv %s572
        %v574 = vmul.f32 %v573, %v504
        %v575 = vmul.f32 %v573, %v505
        %v576 = vadd.f32 %v570, %v574
        %v577 = vadd.f32 %v571, %v575
        %s578 = sld [smem:[#allocation2 + $0x2c]]
        %v579 = vstv %s578
        %v580 = vmul.f32 %v579, %v502
        %v581 = vmul.f32 %v579, %v503
        %v582 = vadd.f32 %v474, %v580
        %v583 = vadd.f32 %v475, %v581
        %s584 = sld [smem:[#allocation2 + $0x5d]]
        %v585 = vstv %s584
        %v586 = vmul.f32 %v585, %v504
        %v587 = vmul.f32 %v585, %v505
        %v588 = vadd.f32 %v582, %v586
        %v589 = vadd.f32 %v583, %v587
        %s590 = scalar_lea.vmem [#allocation6], 3
        %v591 = vld [vmem:[%s590] ss:$8 sm:$0x3]
        %v593 = vlaneseq
        %v594 = vshrl.u32 %v593, 7
        %v595 = vsub.s32 0, %v594
        %v596 = vrot.slane %v591, %v595
        %v597 = vlaneseq
        %v598 = vshrl.u32 %v597, 7
        %v599 = vsub.s32 1, %v598
        %v600 = vrot.slane %v591, %v599
        %v603 = vmul.f32 %v225, %v596
        %v604 = vmul.f32 %v232, %v600
        %v605 = vmul.f32 %v239, %v596
        %v606 = vmul.f32 %v246, %v600
        %s607 = sld [smem:[#allocation2 + $0x3]]
        %v608 = vstv %s607
        %v609 = vmul.f32 %v608, %v603
        %v610 = vmul.f32 %v608, %v604
        %v611 = vadd.f32 %v516, %v609
        %v612 = vadd.f32 %v517, %v610
        %s613 = sld [smem:[#allocation2 + $0x34]]
        %v614 = vstv %s613
        %v615 = vmul.f32 %v614, %v605
        %v616 = vmul.f32 %v614, %v606
        %v617 = vadd.f32 %v611, %v615
        %v618 = vadd.f32 %v612, %v616
        %s619 = sld [smem:[#allocation2 + $0xa]]
        %v620 = vstv %s619
        %v621 = vmul.f32 %v620, %v603
        %v622 = vmul.f32 %v620, %v604
        %v623 = vadd.f32 %v528, %v621
        %v624 = vadd.f32 %v529, %v622
        %s625 = sld [smem:[#allocation2 + $0x3b]]
        %v626 = vstv %s625
        %v627 = vmul.f32 %v626, %v605
        %v628 = vmul.f32 %v626, %v606
        %v629 = vadd.f32 %v623, %v627
        %v630 = vadd.f32 %v624, %v628
        %s631 = sld [smem:[#allocation2 + $0x11]]
        %v632 = vstv %s631
        %v633 = vmul.f32 %v632, %v603
        %v634 = vmul.f32 %v632, %v604
        %v635 = vadd.f32 %v540, %v633
        %v636 = vadd.f32 %v541, %v634
        %s637 = sld [smem:[#allocation2 + $0x42]]
        %v638 = vstv %s637
        %v639 = vmul.f32 %v638, %v605
        %v640 = vmul.f32 %v638, %v606
        %v641 = vadd.f32 %v635, %v639
        %v642 = vadd.f32 %v636, %v640
        %s643 = sld [smem:[#allocation2 + $0x18]]
        %v644 = vstv %s643
        %v645 = vmul.f32 %v644, %v603
        %v646 = vmul.f32 %v644, %v604
        %v647 = vadd.f32 %v552, %v645
        %v648 = vadd.f32 %v553, %v646
        %s649 = sld [smem:[#allocation2 + $0x49]]
        %v650 = vstv %s649
        %v651 = vmul.f32 %v650, %v605
        %v652 = vmul.f32 %v650, %v606
        %v653 = vadd.f32 %v647, %v651
        %v654 = vadd.f32 %v648, %v652
        %s655 = sld [smem:[#allocation2 + $0x1f]]
        %v656 = vstv %s655
        %v657 = vmul.f32 %v656, %v603
        %v658 = vmul.f32 %v656, %v604
        %v659 = vadd.f32 %v564, %v657
        %v660 = vadd.f32 %v565, %v658
        %s661 = sld [smem:[#allocation2 + $0x50]]
        %v662 = vstv %s661
        %v663 = vmul.f32 %v662, %v605
        %v664 = vmul.f32 %v662, %v606
        %v665 = vadd.f32 %v659, %v663
        %v666 = vadd.f32 %v660, %v664
        %s667 = sld [smem:[#allocation2 + $0x26]]
        %v668 = vstv %s667
        %v669 = vmul.f32 %v668, %v603
        %v670 = vmul.f32 %v668, %v604
        %v671 = vadd.f32 %v576, %v669
        %v672 = vadd.f32 %v577, %v670
        %s673 = sld [smem:[#allocation2 + $0x57]]
        %v674 = vstv %s673
        %v675 = vmul.f32 %v674, %v605
        %v676 = vmul.f32 %v674, %v606
        %v677 = vadd.f32 %v671, %v675
        %v678 = vadd.f32 %v672, %v676
        %s679 = sld [smem:[#allocation2 + $0x2d]]
        %v680 = vstv %s679
        %v681 = vmul.f32 %v680, %v603
        %v682 = vmul.f32 %v680, %v604
        %v683 = vadd.f32 %v588, %v681
        %v684 = vadd.f32 %v589, %v682
        %s685 = sld [smem:[#allocation2 + $0x5e]]
        %v686 = vstv %s685
        %v687 = vmul.f32 %v686, %v605
        %v688 = vmul.f32 %v686, %v606
        %v689 = vadd.f32 %v683, %v687
        %v690 = vadd.f32 %v684, %v688
        %s691 = scalar_lea.vmem [#allocation6], 4
        %v692 = vld [vmem:[%s691] ss:$8 sm:$0x3]
        %693 = vrot.lane.b32.xlu0 %v225, 127
        %v694 = vpop.permute.xlu0 %693
        %695 = vrot.lane.b32.xlu0 %v232, 127
        %v696 = vpop.permute.xlu0 %695
        %vm697 = vcmp.lt.s32.totalorder %v253, 127
        %v698 = vsel %vm697, %v694, %v696
        %v699 = vsel %vm697, %v696, %v694
        %700 = vrot.lane.b32.xlu0 %v239, 127
        %v701 = vpop.permute.xlu0 %700
        %702 = vrot.lane.b32.xlu0 %v246, 127
        %v703 = vpop.permute.xlu0 %702
        %v704 = vsel %vm697, %v701, %v703
        %v705 = vsel %vm697, %v703, %v701
        %v707 = vlaneseq
        %v708 = vshrl.u32 %v707, 7
        %v709 = vsub.s32 0, %v708
        %v710 = vrot.slane %v692, %v709
        %v711 = vlaneseq
        %v712 = vshrl.u32 %v711, 7
        %v713 = vsub.s32 1, %v712
        %v714 = vrot.slane %v692, %v713
        %v717 = vmul.f32 %v698, %v710
        %v718 = vmul.f32 %v699, %v714
        %v719 = vmul.f32 %v704, %v710
        %v720 = vmul.f32 %v705, %v714
        %s721 = sld [smem:[#allocation2 + $0x4]]
        %v722 = vstv %s721
        %v723 = vmul.f32 %v722, %v717
        %v724 = vmul.f32 %v722, %v718
        %v725 = vadd.f32 %v617, %v723
        %v726 = vadd.f32 %v618, %v724
        %s727 = sld [smem:[#allocation2 + $0x35]]
        %v728 = vstv %s727
        %v729 = vmul.f32 %v728, %v719
        %v730 = vmul.f32 %v728, %v720
        %v731 = vadd.f32 %v725, %v729
        %v732 = vadd.f32 %v726, %v730
        %s733 = sld [smem:[#allocation2 + $0xb]]
        %v734 = vstv %s733
        %v735 = vmul.f32 %v734, %v717
        %v736 = vmul.f32 %v734, %v718
        %v737 = vadd.f32 %v629, %v735
        %v738 = vadd.f32 %v630, %v736
        %s739 = sld [smem:[#allocation2 + $0x3c]]
        %v740 = vstv %s739
        %v741 = vmul.f32 %v740, %v719
        %v742 = vmul.f32 %v740, %v720
        %v743 = vadd.f32 %v737, %v741
        %v744 = vadd.f32 %v738, %v742
        %s745 = sld [smem:[#allocation2 + $0x12]]
        %v746 = vstv %s745
        %v747 = vmul.f32 %v746, %v717
        %v748 = vmul.f32 %v746, %v718
        %v749 = vadd.f32 %v641, %v747
        %v750 = vadd.f32 %v642, %v748
        %s751 = sld [smem:[#allocation2 + $0x43]]
        %v752 = vstv %s751
        %v753 = vmul.f32 %v752, %v719
        %v754 = vmul.f32 %v752, %v720
        %v755 = vadd.f32 %v749, %v753
        %v756 = vadd.f32 %v750, %v754
        %s757 = sld [smem:[#allocation2 + $0x19]]
        %v758 = vstv %s757
        %v759 = vmul.f32 %v758, %v717
        %v760 = vmul.f32 %v758, %v718
        %v761 = vadd.f32 %v653, %v759
        %v762 = vadd.f32 %v654, %v760
        %s763 = sld [smem:[#allocation2 + $0x4a]]
        %v764 = vstv %s763
        %v765 = vmul.f32 %v764, %v719
        %v766 = vmul.f32 %v764, %v720
        %v767 = vadd.f32 %v761, %v765
        %v768 = vadd.f32 %v762, %v766
        %s769 = sld [smem:[#allocation2 + $0x20]]
        %v770 = vstv %s769
        %v771 = vmul.f32 %v770, %v717
        %v772 = vmul.f32 %v770, %v718
        %v773 = vadd.f32 %v665, %v771
        %v774 = vadd.f32 %v666, %v772
        %s775 = sld [smem:[#allocation2 + $0x51]]
        %v776 = vstv %s775
        %v777 = vmul.f32 %v776, %v719
        %v778 = vmul.f32 %v776, %v720
        %v779 = vadd.f32 %v773, %v777
        %v780 = vadd.f32 %v774, %v778
        %s781 = sld [smem:[#allocation2 + $0x27]]
        %v782 = vstv %s781
        %v783 = vmul.f32 %v782, %v717
        %v784 = vmul.f32 %v782, %v718
        %v785 = vadd.f32 %v677, %v783
        %v786 = vadd.f32 %v678, %v784
        %s787 = sld [smem:[#allocation2 + $0x58]]
        %v788 = vstv %s787
        %v789 = vmul.f32 %v788, %v719
        %v790 = vmul.f32 %v788, %v720
        %v791 = vadd.f32 %v785, %v789
        %v792 = vadd.f32 %v786, %v790
        %s793 = sld [smem:[#allocation2 + $0x2e]]
        %v794 = vstv %s793
        %v795 = vmul.f32 %v794, %v717
        %v796 = vmul.f32 %v794, %v718
        %v797 = vadd.f32 %v689, %v795
        %v798 = vadd.f32 %v690, %v796
        %s799 = sld [smem:[#allocation2 + $0x5f]]
        %v800 = vstv %s799
        %v801 = vmul.f32 %v800, %v719
        %v802 = vmul.f32 %v800, %v720
        %v803 = vadd.f32 %v797, %v801
        %v804 = vadd.f32 %v798, %v802
        %s805 = scalar_lea.vmem [#allocation6], 5
        %v806 = vld [vmem:[%s805] ss:$8 sm:$0x3]
        %807 = vrot.lane.b32.xlu0 %v225, 126
        %v808 = vpop.permute.xlu0 %807
        %809 = vrot.lane.b32.xlu0 %v232, 126
        %v810 = vpop.permute.xlu0 %809
        %vm811 = vcmp.lt.s32.totalorder %v253, 126
        %v812 = vsel %vm811, %v808, %v810
        %v813 = vsel %vm811, %v810, %v808
        %814 = vrot.lane.b32.xlu0 %v239, 126
        %v815 = vpop.permute.xlu0 %814
        %816 = vrot.lane.b32.xlu0 %v246, 126
        %v817 = vpop.permute.xlu0 %816
        %v818 = vsel %vm811, %v815, %v817
        %v819 = vsel %vm811, %v817, %v815
        %v821 = vlaneseq
        %v822 = vshrl.u32 %v821, 7
        %v823 = vsub.s32 0, %v822
        %v824 = vrot.slane %v806, %v823
        %v825 = vlaneseq
        %v826 = vshrl.u32 %v825, 7
        %v827 = vsub.s32 1, %v826
        %v828 = vrot.slane %v806, %v827
        %v831 = vmul.f32 %v812, %v824
        %v832 = vmul.f32 %v813, %v828
        %v833 = vmul.f32 %v818, %v824
        %v834 = vmul.f32 %v819, %v828
        %s835 = sld [smem:[#allocation2 + $0x5]]
        %v836 = vstv %s835
        %v837 = vmul.f32 %v836, %v831
        %v838 = vmul.f32 %v836, %v832
        %v839 = vadd.f32 %v731, %v837
        %v840 = vadd.f32 %v732, %v838
        %s841 = sld [smem:[#allocation2 + $0x36]]
        %v842 = vstv %s841
        %v843 = vmul.f32 %v842, %v833
        %v844 = vmul.f32 %v842, %v834
        %v845 = vadd.f32 %v839, %v843
        %v846 = vadd.f32 %v840, %v844
        %s847 = sld [smem:[#allocation2 + $0xc]]
        %v848 = vstv %s847
        %v849 = vmul.f32 %v848, %v831
        %v850 = vmul.f32 %v848, %v832
        %v851 = vadd.f32 %v743, %v849
        %v852 = vadd.f32 %v744, %v850
        %s853 = sld [smem:[#allocation2 + $0x3d]]
        %v854 = vstv %s853
        %v855 = vmul.f32 %v854, %v833
        %v856 = vmul.f32 %v854, %v834
        %v857 = vadd.f32 %v851, %v855
        %v858 = vadd.f32 %v852, %v856
        %s859 = sld [smem:[#allocation2 + $0x13]]
        %v860 = vstv %s859
        %v861 = vmul.f32 %v860, %v831
        %v862 = vmul.f32 %v860, %v832
        %v863 = vadd.f32 %v755, %v861
        %v864 = vadd.f32 %v756, %v862
        %s865 = sld [smem:[#allocation2 + $0x44]]
        %v866 = vstv %s865
        %v867 = vmul.f32 %v866, %v833
        %v868 = vmul.f32 %v866, %v834
        %v869 = vadd.f32 %v863, %v867
        %v870 = vadd.f32 %v864, %v868
        %s871 = sld [smem:[#allocation2 + $0x1a]]
        %v872 = vstv %s871
        %v873 = vmul.f32 %v872, %v831
        %v874 = vmul.f32 %v872, %v832
        %v875 = vadd.f32 %v767, %v873
        %v876 = vadd.f32 %v768, %v874
        %s877 = sld [smem:[#allocation2 + $0x4b]]
        %v878 = vstv %s877
        %v879 = vmul.f32 %v878, %v833
        %v880 = vmul.f32 %v878, %v834
        %v881 = vadd.f32 %v875, %v879
        %v882 = vadd.f32 %v876, %v880
        %s883 = sld [smem:[#allocation2 + $0x21]]
        %v884 = vstv %s883
        %v885 = vmul.f32 %v884, %v831
        %v886 = vmul.f32 %v884, %v832
        %v887 = vadd.f32 %v779, %v885
        %v888 = vadd.f32 %v780, %v886
        %s889 = sld [smem:[#allocation2 + $0x52]]
        %v890 = vstv %s889
        %v891 = vmul.f32 %v890, %v833
        %v892 = vmul.f32 %v890, %v834
        %v893 = vadd.f32 %v887, %v891
        %v894 = vadd.f32 %v888, %v892
        %s895 = sld [smem:[#allocation2 + $0x28]]
        %v896 = vstv %s895
        %v897 = vmul.f32 %v896, %v831
        %v898 = vmul.f32 %v896, %v832
        %v899 = vadd.f32 %v791, %v897
        %v900 = vadd.f32 %v792, %v898
        %s901 = sld [smem:[#allocation2 + $0x59]]
        %v902 = vstv %s901
        %v903 = vmul.f32 %v902, %v833
        %v904 = vmul.f32 %v902, %v834
        %v905 = vadd.f32 %v899, %v903
        %v906 = vadd.f32 %v900, %v904
        %s907 = sld [smem:[#allocation2 + $0x2f]]
        %v908 = vstv %s907
        %v909 = vmul.f32 %v908, %v831
        %v910 = vmul.f32 %v908, %v832
        %v911 = vadd.f32 %v803, %v909
        %v912 = vadd.f32 %v804, %v910
        %s913 = sld [smem:[#allocation2 + $0x60]]
        %v914 = vstv %s913
        %v915 = vmul.f32 %v914, %v833
        %v916 = vmul.f32 %v914, %v834
        %v917 = vadd.f32 %v911, %v915
        %v918 = vadd.f32 %v912, %v916
        %s919 = scalar_lea.vmem [#allocation6], 6
        %v920 = vld [vmem:[%s919] ss:$8 sm:$0x3]
        %921 = vrot.lane.b32.xlu0 %v225, 125
        %v922 = vpop.permute.xlu0 %921
        %923 = vrot.lane.b32.xlu0 %v232, 125
        %v924 = vpop.permute.xlu0 %923
        %vm925 = vcmp.lt.s32.totalorder %v253, 125
        %v926 = vsel %vm925, %v922, %v924
        %v927 = vsel %vm925, %v924, %v922
        %928 = vrot.lane.b32.xlu0 %v239, 125
        %v929 = vpop.permute.xlu0 %928
        %930 = vrot.lane.b32.xlu0 %v246, 125
        %v931 = vpop.permute.xlu0 %930
        %v932 = vsel %vm925, %v929, %v931
        %v933 = vsel %vm925, %v931, %v929
        %v935 = vlaneseq
        %v936 = vshrl.u32 %v935, 7
        %v937 = vsub.s32 0, %v936
        %v938 = vrot.slane %v920, %v937
        %v939 = vlaneseq
        %v940 = vshrl.u32 %v939, 7
        %v941 = vsub.s32 1, %v940
        %v942 = vrot.slane %v920, %v941
        %v945 = vmul.f32 %v926, %v938
        %v946 = vmul.f32 %v927, %v942
        %v947 = vmul.f32 %v932, %v938
        %v948 = vmul.f32 %v933, %v942
        %s949 = sld [smem:[#allocation2 + $0x6]]
        %v950 = vstv %s949
        %v951 = vmul.f32 %v950, %v945
        %v952 = vmul.f32 %v950, %v946
        %v953 = vadd.f32 %v845, %v951
        %v954 = vadd.f32 %v846, %v952
        %s955 = sld [smem:[#allocation2 + $0x37]]
        %v956 = vstv %s955
        %v957 = vmul.f32 %v956, %v947
        %v958 = vmul.f32 %v956, %v948
        %v959 = vadd.f32 %v953, %v957
        %v960 = vadd.f32 %v954, %v958
        %s961 = sld [smem:[#allocation2 + $0xd]]
        %v962 = vstv %s961
        %v963 = vmul.f32 %v962, %v945
        %v964 = vmul.f32 %v962, %v946
        %v965 = vadd.f32 %v857, %v963
        %v966 = vadd.f32 %v858, %v964
        %s967 = sld [smem:[#allocation2 + $0x3e]]
        %v968 = vstv %s967
        %v969 = vmul.f32 %v968, %v947
        %v970 = vmul.f32 %v968, %v948
        %v971 = vadd.f32 %v965, %v969
        %v972 = vadd.f32 %v966, %v970
        %s973 = sld [smem:[#allocation2 + $0x14]]
        %v974 = vstv %s973
        %v975 = vmul.f32 %v974, %v945
        %v976 = vmul.f32 %v974, %v946
        %v977 = vadd.f32 %v869, %v975
        %v978 = vadd.f32 %v870, %v976
        %s979 = sld [smem:[#allocation2 + $0x45]]
        %v980 = vstv %s979
        %v981 = vmul.f32 %v980, %v947
        %v982 = vmul.f32 %v980, %v948
        %v983 = vadd.f32 %v977, %v981
        %v984 = vadd.f32 %v978, %v982
        %s985 = sld [smem:[#allocation2 + $0x1b]]
        %v986 = vstv %s985
        %v987 = vmul.f32 %v986, %v945
        %v988 = vmul.f32 %v986, %v946
        %v989 = vadd.f32 %v881, %v987
        %v990 = vadd.f32 %v882, %v988
        %s991 = sld [smem:[#allocation2 + $0x4c]]
        %v992 = vstv %s991
        %v993 = vmul.f32 %v992, %v947
        %v994 = vmul.f32 %v992, %v948
        %v995 = vadd.f32 %v989, %v993
        %v996 = vadd.f32 %v990, %v994
        %s997 = sld [smem:[#allocation2 + $0x22]]
        %v998 = vstv %s997
        %v999 = vmul.f32 %v998, %v945
        %v1000 = vmul.f32 %v998, %v946
        %v1001 = vadd.f32 %v893, %v999
        %v1002 = vadd.f32 %v894, %v1000
        %s1003 = sld [smem:[#allocation2 + $0x53]]
        %v1004 = vstv %s1003
        %v1005 = vmul.f32 %v1004, %v947
        %v1006 = vmul.f32 %v1004, %v948
        %v1007 = vadd.f32 %v1001, %v1005
        %v1008 = vadd.f32 %v1002, %v1006
        %s1009 = sld [smem:[#allocation2 + $0x29]]
        %v1010 = vstv %s1009
        %v1011 = vmul.f32 %v1010, %v945
        %v1012 = vmul.f32 %v1010, %v946
        %v1013 = vadd.f32 %v905, %v1011
        %v1014 = vadd.f32 %v906, %v1012
        %s1015 = sld [smem:[#allocation2 + $0x5a]]
        %v1016 = vstv %s1015
        %v1017 = vmul.f32 %v1016, %v947
        %v1018 = vmul.f32 %v1016, %v948
        %v1019 = vadd.f32 %v1013, %v1017
        %v1020 = vadd.f32 %v1014, %v1018
        %s1021 = sld [smem:[#allocation2 + $0x30]]
        %v1022 = vstv %s1021
        %v1023 = vmul.f32 %v1022, %v945
        %v1024 = vmul.f32 %v1022, %v946
        %v1025 = vadd.f32 %v917, %v1023
        %v1026 = vadd.f32 %v918, %v1024
        %s1027 = sld [smem:[#allocation2 + $0x61]]
        %v1028 = vstv %s1027
        %v1029 = vmul.f32 %v1028, %v947
        %v1030 = vmul.f32 %v1028, %v948
        %v1031 = vadd.f32 %v1025, %v1029
        %v1032 = vadd.f32 %v1026, %v1030
        %1033 = vrot.lane.b32.xlu0 %v959, 48
        %v1034 = vpop.permute.xlu0 %1033
        %1035 = vrot.lane.b32.xlu0 %v960, 48
        %v1036 = vpop.permute.xlu0 %1035
        %vm1037 = vcmp.lt.s32.totalorder %v253, 48
        %v1038 = vsel %vm1037, %v1034, %v1036
        %v1039 = vsel %vm1037, %v1036, %v1034
        %s1040 = scalar_lea.vmem [#allocation6], 7
        %v1041 = vld [vmem:[%s1040] ss:$8 sm:$0x3]
        %v1043 = vlaneseq
        %v1044 = vshrl.u32 %v1043, 7
        %v1045 = vsub.s32 0, %v1044
        %v1046 = vrot.slane %v1041, %v1045
        %v1047 = vlaneseq
        %v1048 = vshrl.u32 %v1047, 7
        %v1049 = vsub.s32 1, %v1048
        %v1050 = vrot.slane %v1041, %v1049
        %v1053 = vmul.f32 %v1039, %v1046
        %v1054 = vmul.f32 %v1038, %v1050
        %v1055 = vadd.f32 %v1053, 0.0
        %v1056 = vadd.f32 %v1054, 0.0
        %1057 = vrot.lane.b32.xlu0 %v971, 32
        %v1058 = vpop.permute.xlu0 %1057
        %1059 = vrot.lane.b32.xlu0 %v972, 32
        %v1060 = vpop.permute.xlu0 %1059
        %vm1061 = vcmp.lt.s32.totalorder %v253, 32
        %v1062 = vsel %vm1061, %v1058, %v1060
        %v1063 = vsel %vm1061, %v1060, %v1058
        %s1064 = scalar_lea.vmem [#allocation6], 16
        %v1065 = vld [vmem:[%s1064] ss:$8 sm:$0x3]
        %v1067 = vlaneseq
        %v1068 = vshrl.u32 %v1067, 7
        %v1069 = vsub.s32 0, %v1068
        %v1070 = vrot.slane %v1065, %v1069
        %v1071 = vlaneseq
        %v1072 = vshrl.u32 %v1071, 7
        %v1073 = vsub.s32 1, %v1072
        %v1074 = vrot.slane %v1065, %v1073
        %v1077 = vmul.f32 %v1063, %v1070
        %v1078 = vmul.f32 %v1062, %v1074
        %v1079 = vadd.f32 %v1055, %v1077
        %v1080 = vadd.f32 %v1056, %v1078
        %1081 = vrot.lane.b32.xlu0 %v983, 16
        %v1082 = vpop.permute.xlu0 %1081
        %1083 = vrot.lane.b32.xlu0 %v984, 16
        %v1084 = vpop.permute.xlu0 %1083
        %vm1085 = vcmp.lt.s32.totalorder %v253, 16
        %v1086 = vsel %vm1085, %v1082, %v1084
        %v1087 = vsel %vm1085, %v1084, %v1082
        %s1088 = scalar_lea.vmem [#allocation6], 17
        %v1089 = vld [vmem:[%s1088] ss:$8 sm:$0x3]
        %v1091 = vlaneseq
        %v1092 = vshrl.u32 %v1091, 7
        %v1093 = vsub.s32 0, %v1092
        %v1094 = vrot.slane %v1089, %v1093
        %v1095 = vlaneseq
        %v1096 = vshrl.u32 %v1095, 7
        %v1097 = vsub.s32 1, %v1096
        %v1098 = vrot.slane %v1089, %v1097
        %v1101 = vmul.f32 %v1087, %v1094
        %v1102 = vmul.f32 %v1086, %v1098
        %v1103 = vadd.f32 %v1079, %v1101
        %v1104 = vadd.f32 %v1080, %v1102
        %s1105 = scalar_lea.vmem [#allocation6], 18
        %v1106 = vld [vmem:[%s1105] ss:$8 sm:$0x3]
        %v1108 = vlaneseq
        %v1109 = vshrl.u32 %v1108, 7
        %v1110 = vsub.s32 0, %v1109
        %v1111 = vrot.slane %v1106, %v1110
        %v1112 = vlaneseq
        %v1113 = vshrl.u32 %v1112, 7
        %v1114 = vsub.s32 1, %v1113
        %v1115 = vrot.slane %v1106, %v1114
        %v1118 = vmul.f32 %v995, %v1111
        %v1119 = vmul.f32 %v996, %v1115
        %v1120 = vadd.f32 %v1103, %v1118
        %v1121 = vadd.f32 %v1104, %v1119
        %1122 = vrot.lane.b32.xlu0 %v1007, 112
        %v1123 = vpop.permute.xlu0 %1122
        %1124 = vrot.lane.b32.xlu0 %v1008, 112
        %v1125 = vpop.permute.xlu0 %1124
        %vm1126 = vcmp.lt.s32.totalorder %v253, 112
        %v1127 = vsel %vm1126, %v1123, %v1125
        %v1128 = vsel %vm1126, %v1125, %v1123
        %s1129 = scalar_lea.vmem [#allocation6], 19
        %v1130 = vld [vmem:[%s1129] ss:$8 sm:$0x3]
        %v1132 = vlaneseq
        %v1133 = vshrl.u32 %v1132, 7
        %v1134 = vsub.s32 0, %v1133
        %v1135 = vrot.slane %v1130, %v1134
        %v1136 = vlaneseq
        %v1137 = vshrl.u32 %v1136, 7
        %v1138 = vsub.s32 1, %v1137
        %v1139 = vrot.slane %v1130, %v1138
        %v1142 = vmul.f32 %v1127, %v1135
        %v1143 = vmul.f32 %v1128, %v1139
        %v1144 = vadd.f32 %v1120, %v1142
        %v1145 = vadd.f32 %v1121, %v1143
        %1146 = vrot.lane.b32.xlu0 %v1019, 96
        %v1147 = vpop.permute.xlu0 %1146
        %1148 = vrot.lane.b32.xlu0 %v1020, 96
        %v1149 = vpop.permute.xlu0 %1148
        %vm1150 = vcmp.lt.s32.totalorder %v253, 96
        %v1151 = vsel %vm1150, %v1147, %v1149
        %v1152 = vsel %vm1150, %v1149, %v1147
        %s1153 = scalar_lea.vmem [#allocation6], 20
        %v1154 = vld [vmem:[%s1153] ss:$8 sm:$0x3]
        %v1156 = vlaneseq
        %v1157 = vshrl.u32 %v1156, 7
        %v1158 = vsub.s32 0, %v1157
        %v1159 = vrot.slane %v1154, %v1158
        %v1160 = vlaneseq
        %v1161 = vshrl.u32 %v1160, 7
        %v1162 = vsub.s32 1, %v1161
        %v1163 = vrot.slane %v1154, %v1162
        %v1166 = vmul.f32 %v1151, %v1159
        %v1167 = vmul.f32 %v1152, %v1163
        %v1168 = vadd.f32 %v1144, %v1166
        %v1169 = vadd.f32 %v1145, %v1167
        %1170 = vrot.lane.b32.xlu0 %v1031, 80
        %v1171 = vpop.permute.xlu0 %1170
        %1172 = vrot.lane.b32.xlu0 %v1032, 80
        %v1173 = vpop.permute.xlu0 %1172
        %vm1174 = vcmp.lt.s32.totalorder %v253, 80
        %v1175 = vsel %vm1174, %v1171, %v1173
        %v1176 = vsel %vm1174, %v1173, %v1171
        %s1177 = scalar_lea.vmem [#allocation6], 21
        %v1178 = vld [vmem:[%s1177] ss:$8 sm:$0x3]
        %v1180 = vlaneseq
        %v1181 = vshrl.u32 %v1180, 7
        %v1182 = vsub.s32 0, %v1181
        %v1183 = vrot.slane %v1178, %v1182
        %v1184 = vlaneseq
        %v1185 = vshrl.u32 %v1184, 7
        %v1186 = vsub.s32 1, %v1185
        %v1187 = vrot.slane %v1178, %v1186
        %v1190 = vmul.f32 %v1175, %v1183
        %v1191 = vmul.f32 %v1176, %v1187
        %v1192 = vadd.f32 %v1168, %v1190
        %v1193 = vadd.f32 %v1169, %v1191
        %s1194 = sld [smem:[#allocation2 + $0x62]]
        %v1195 = vstv %s1194
        %v1196 = vadd.f32 %v1192, %v1195
        %v1197 = vadd.f32 %v1193, %v1195
        %v1198 = vxor.u32 %v1196, 2147483648
        %v1199 = vxor.u32 %v1197, 2147483648
        %v1200 = vmul.f32 %v1198, 1.442695
        %v1201 = vpow.pop %v1200
        %v1202 = vmul.f32 %v1199, 1.442695
        %v1203 = vpow.pop %v1202
        %v1204 = vadd.f32 %v1201, 1.0
        %v1205 = vadd.f32 %v1203, 1.0
        %v1206 = vrcp.pop %v1204
        %v1207 = vmul.f32 1.0, %v1206
        %v1208 = vrcp.pop %v1205
        %v1209 = vmul.f32 1.0, %v1208
        %v1210 = vlaneseq
        %v1211 = vshrl.u32 %v1210, 7
        %v1212 = vsub.s32 0, %v1211
        %v1213 = vrot.slane %v1207, %v1212
        %v1214 = vlaneseq
        %v1215 = vshrl.u32 %v1214, 7
        %v1216 = vsub.s32 0, %v1215
        %v1217 = vrot.slane %v1209, %v1216
        %v1220 = vcombine.low %v1213, %v1217
        %v1222 = vmul.f32 %v214, %v1220
        %1223 = vst [vmem:[%s213] sm:$0xff] %v1222
        %s1224 = sand.u32 %s98, 1
        %s1225 = scalar_lea.sflag [#allocation4], %s1224
        %s1226 = sand.u32 %s98, 1
        %s1227 = smul.addr %s1226, 8
        %s1228 = scalar_lea.vmem [#allocation9], %s1227
        // Predicated region
        $region45: #{tpu_custom_call.1} parent=31 // pred_check
          %p1229 = pneg %p108
        $region46: #{tpu_custom_call.1} parent=31 // pred_check_branch
          %1231 = sbr.rel (%p1229) target = $region48
        $region47: #{tpu_custom_call.1} parent=31 // pred_region
          %s1233 = ssub.s32 128, 128
          %1234 = vsyncadd %s1225, %s1233
          %s1235 = smul.addr %s22, 2
          %s1236 = smul.addr %s1235, 64
          %s1237 = scalar_lea.hbm %s3, %s1236
          %s1239 = sshll.u32 %s1228, 4
          %s1240 = int_to_ptr.vmem [resolvable:$true] %s1239
          %1242 = dma.vmem_to_hbm [thread:$0]  %s1240, 128, %s1237, %s1225
        $region48: #{tpu_custom_call.1} parent=31 // pred_fallthru
          _
      $region32: #{tpu_custom_call.1} parent=5 // pred_fallthru
        _
      %p1243 = scmp.le.s32.totalorder 2, %s17
      // Predicated region
      $region49: #{tpu_custom_call.1} parent=5 // pred_check
        %p1244 = pneg %p1243
      $region50: #{tpu_custom_call.1} parent=5 // pred_check_branch
        %1246 = sbr.rel (%p1244) target = $region52
      $region51: #{tpu_custom_call.1} parent=5 // pred_region
        %s1247 = ssub.s32 %s17, 2
        // Predicated region
        $region53: #{tpu_custom_call.1} parent=51 // pred_check
          %p1248 = pneg %p114
        $region54: #{tpu_custom_call.1} parent=51 // pred_check_branch
          %1250 = sbr.rel (%p1248) target = $region56
        $region55: #{tpu_custom_call.1} parent=51 // pred_region
          %s1251 = sand.u32 %s99, 1
          %s1252 = scalar_lea.sflag [#allocation4], %s1251
          %s1253 = sand.u32 %s99, 1
          %s1254 = smul.addr %s1253, 8
          %s1255 = scalar_lea.vmem [#allocation9], %s1254
          %1256 = dma.done %s1252, 128
        $region56: #{tpu_custom_call.1} parent=51 // pred_fallthru
          _
      $region52: #{tpu_custom_call.1} parent=5 // pred_fallthru
        _
    $region6: #{tpu_custom_call.1} parent=1 // loop_footer
      %s21 = sadd.s32 1, %s17
    $region7: #{tpu_custom_call.1} parent=1 // loop_footer_branch
      %16 = sbr.rel target = $region3
    $region8: #{tpu_custom_call.1} parent=1 // loop_exit
      _
    %1257 = vsyncpa [#allocation3], 1
    %s1258 = scalar_lea.sflag [#allocation3], 1
    %1259 = vsyncpa %s1258, 1
    %1260 = vsyncpa [#allocation8], 1
    %s1261 = scalar_lea.sflag [#allocation8], 1
    %1262 = vsyncpa %s1261, 1
    %1263 = vsyncpa [#allocation4], 1
    %s1264 = scalar_lea.sflag [#allocation4], 1
    %1265 = vsyncpa %s1264, 1
    %1266 = vsyncpa [#allocation5], 1
    %s1267 = scalar_lea.sflag [#allocation5], 1
    %1268 = vsyncpa %s1267, 1

</llo_original>
